<compile_context>
chip_gen: v7x
topology: tpu7x:2x2x1
jax: 0.10.0
libtpu: 0.0.40
codegen_flags: <defaults>
</compile_context>

<pallas_src>
import jax
import jax.numpy as jnp
from jax import lax
from jax.experimental import pallas as pl
from jax.experimental.pallas import tpu as pltpu

LN_EPS = 1e-5
_SUBLANE = 8


def _pick_row_tile(seq_len_padded: int) -> int:
    """Largest tile (multiple of 8, <=512) dividing the padded sequence length."""
    for ts in (512, 256, 128, 64, 32, 16, 8):
        if seq_len_padded % ts == 0:
            return ts
    return seq_len_padded  # unreachable: seq_len_padded is a multiple of 8


def _vmem_capacity_bytes() -> int:
    try:
        return int(pltpu.get_tpu_info().vmem_capacity_bytes)
    except Exception:
        return 64 * 1024 * 1024  # conservative: v7x per-TensorCore capacity


def _make_kernel(S_pad: int, TS: int, D: int):
    rows_per_step = TS // _SUBLANE

    def kernel(tok_ids_ref,   # SMEM (B*S_pad,) int32   [scalar prefetch]
               segf_ref,      # VMEM (1, TS, 1) f32     per-token segment id
               tok_hbm,       # ANY  (V, D)             token table, stays in HBM
               pos_ref,       # VMEM (TS, D) f32        contiguous position slice
               seg_tab_ref,   # VMEM (2, D)  f32        segment table (resident)
               gamma_ref,     # VMEM (1, D)  f32
               beta_ref,      # VMEM (1, D)  f32
               out_ref,       # VMEM (1, TS, D)
               tok_buf,       # VMEM (2, TS, D)         gather double buffer
               copy_sems):    # DMA semaphores, shape (2,)
        b = pl.program_id(0)
        j = pl.program_id(1)
        n_j = pl.num_programs(1)
        cur = j % 2
        nxt = 1 - cur

        def issue_tile(jj, slot):
            base = b * S_pad + jj * TS

            def body8(k, carry):
                i0 = k * _SUBLANE
                for u in range(_SUBLANE):
                    i = i0 + u
                    rid = tok_ids_ref[base + i]
                    pltpu.make_async_copy(
                        tok_hbm.at[pl.ds(rid, 1), :],
                        tok_buf.at[slot, pl.ds(i, 1), :],
                        copy_sems.at[slot],
                    ).start()
                return carry

            lax.fori_loop(0, rows_per_step, body8, 0)

        # Prologue of each batch row: fetch its first tile into the current slot.
        @pl.when(j == 0)
        def _():
            issue_tile(0, cur)

        # Prefetch the next tile's rows while the current tile drains/computes.
        @pl.when(j + 1 < n_j)
        def _():
            issue_tile(j + 1, nxt)

        # Non-gathered part (positions + segment select) while DMAs are in flight.
        row0 = seg_tab_ref[0:1, :].astype(jnp.float32)                 # (1, D)
        delta = seg_tab_ref[1:2, :].astype(jnp.float32) - row0         # (1, D)
        # segment ids are 0/1 (nn.Embedding(2, D)), so row0 + id*delta is exact.
        rest = pos_ref[...].astype(jnp.float32) + row0 + segf_ref[0] * delta

        # Drain the TS row copies of the current tile (1:1 waits, same-size desc).
        def drain8(k, carry):
            for _ in range(_SUBLANE):
                pltpu.make_async_copy(
                    tok_hbm.at[pl.ds(0, 1), :],
                    tok_buf.at[cur, pl.ds(0, 1), :],
                    copy_sems.at[cur],
                ).wait()
            return carry

        lax.fori_loop(0, rows_per_step, drain8, 0)

        # Sum + LayerNorm (gamma folded into the rsqrt scale); f32 math.
        x = tok_buf[cur].astype(jnp.float32) + rest                     # (TS, D)
        mean = jnp.mean(x, axis=-1, keepdims=True)
        centered = x - mean
        var = jnp.mean(centered * centered, axis=-1, keepdims=True)
        scale = gamma_ref[...].astype(jnp.float32) * lax.rsqrt(var + LN_EPS)
        y = centered * scale + beta_ref[...].astype(jnp.float32)

        # Dropout in eval mode is the identity.
        out_ref[0] = y.astype(out_ref.dtype)

    return kernel


def bert_embeddings(input_ids, segment_ids, token_table, position_table,
                    segment_table, gamma, beta, *, out_dtype=jnp.float32):
    """Pallas implementation of BertEmbeddings.forward (eval mode)."""
    B, S = input_ids.shape
    V, D = token_table.shape
    assert D % 128 == 0, "hidden dim must be a multiple of 128 (lane-aligned)"
    assert position_table.shape[0] >= S, "sequence longer than position table"
    assert segment_table.shape[0] == 2, "segment (token-type) ids must be 0/1"

    if segment_ids is None:
        segment_ids = jnp.zeros_like(input_ids)

    # Pad the sequence to a sublane multiple so (TS, D) blocks obey (8, 128).
    S_pad = ((S + _SUBLANE - 1) // _SUBLANE) * _SUBLANE
    pad = S_pad - S
    ids = input_ids.astype(jnp.int32)
    segs = segment_ids.astype(jnp.int32)
    pos = position_table[:S].astype(jnp.float32)
    if pad:
        ids = jnp.pad(ids, ((0, 0), (0, pad)))
        segs = jnp.pad(segs, ((0, 0), (0, pad)))
        pos = jnp.pad(pos, ((0, pad), (0, 0)))

    TS = _pick_row_tile(S_pad)
    n_tiles = S_pad // TS

    tok_idx = ids.reshape(B * S_pad)                        # SMEM scalar prefetch
    segf = segs.astype(jnp.float32).reshape(B, S_pad, 1)    # per-token segment id
    gamma2d = gamma.reshape(1, D).astype(jnp.float32)
    beta2d = beta.reshape(1, D).astype(jnp.float32)
    seg_tab = segment_table.astype(jnp.float32)

    kernel = _make_kernel(S_pad, TS, D)

    grid_spec = pltpu.PrefetchScalarGridSpec(
        num_scalar_prefetch=1,
        grid=(B, n_tiles),
        in_specs=[
            pl.BlockSpec((1, TS, 1), lambda b, j, ids_ref: (b, j, 0)),  # seg ids
            pl.BlockSpec(memory_space=pl.ANY),                          # token table (HBM)
            pl.BlockSpec((TS, D), lambda b, j, ids_ref: (j, 0)),        # positions
            pl.BlockSpec((2, D), lambda b, j, ids_ref: (0, 0)),         # segment table
            pl.BlockSpec((1, D), lambda b, j, ids_ref: (0, 0)),         # gamma
            pl.BlockSpec((1, D), lambda b, j, ids_ref: (0, 0)),         # beta
        ],
        out_specs=pl.BlockSpec((1, TS, D), lambda b, j, ids_ref: (b, j, 0)),
        scratch_shapes=[
            pltpu.VMEM((2, TS, D), token_table.dtype),   # gather double buffer
            pltpu.SemaphoreType.DMA((2,)),
        ],
    )

    # VMEM budget: actual allocations (pipeline buffers x2 where applicable) plus
    # headroom, capped at 90% of the physical per-core VMEM (64 MiB on v7x).
    out_size = jnp.dtype(out_dtype).itemsize
    need = (2 * TS * D * token_table.dtype.itemsize   # gather scratch (2 slots)
            + 2 * TS * D * 4                          # position tiles (x2 buffers)
            + 2 * TS * D * out_size                   # output tiles   (x2 buffers)
            + 2 * TS * 4                              # segment-id tiles
            + 2 * 4 * D * 4)                          # seg table + gamma + beta
    cap = _vmem_capacity_bytes()
    vmem_limit = min(int(0.9 * cap), max(need + (8 << 20), 32 << 20))

    out = pl.pallas_call(
        kernel,
        out_shape=jax.ShapeDtypeStruct((B, S_pad, D), out_dtype),
        grid_spec=grid_spec,
        compiler_params=pltpu.CompilerParams(
            dimension_semantics=("parallel", "arbitrary"),
            vmem_limit_bytes=vmem_limit,
        ),
    )(tok_idx, segf, token_table, pos, seg_tab, gamma2d, beta2d)

    return out[:, :S, :] if pad else out


def _reference(input_ids, segment_ids, token_table, position_table,
               segment_table, gamma, beta):
    B, S = input_ids.shape
    pos_ids = jnp.arange(S, dtype=jnp.int32)
    if segment_ids is None:
        segment_ids = jnp.zeros_like(input_ids)
    x = (token_table[input_ids]
         + position_table[pos_ids][None, :, :]
         + segment_table[segment_ids])
    mean = jnp.mean(x, axis=-1, keepdims=True)
    var = jnp.mean((x - mean) ** 2, axis=-1, keepdims=True)
    return (x - mean) / jnp.sqrt(var + LN_EPS) * gamma + beta


if __name__ == "__main__":
    key = jax.random.PRNGKey(0)
    configs = [
        # (vocab, d_model, max_seq_len, batch, seq)
        (64, 128, 16, 2, 8),    # small base config
        (64, 128, 32, 2, 24),   # multi-tile: exercises cross-tile DMA prefetch
        (64, 128, 16, 1, 10),   # ragged seq: exercises sublane padding path
    ]
    for (vocab_size, d_model, max_seq_len, batch, seq) in configs:
        key, k_tok, k_pos, k_seg, k_g, k_b, k_ids, k_sids = jax.random.split(key, 8)
        token_table = jax.random.normal(k_tok, (vocab_size, d_model), jnp.float32)
        position_table = jax.random.normal(k_pos, (max_seq_len, d_model), jnp.float32)
        segment_table = jax.random.normal(k_seg, (2, d_model), jnp.float32)
        gamma = 1.0 + 0.1 * jax.random.normal(k_g, (d_model,), jnp.float32)
        beta = 0.1 * jax.random.normal(k_b, (d_model,), jnp.float32)
        input_ids = jax.random.randint(k_ids, (batch, seq), 0, vocab_size, jnp.int32)
        segment_ids = jax.random.randint(k_sids, (batch, seq), 0, 2, jnp.int32)

        out = bert_embeddings(input_ids, segment_ids, token_table, position_table,
                              segment_table, gamma, beta)
        out = jax.block_until_ready(out)

        ref = _reference(input_ids, segment_ids, token_table, position_table,
                         segment_table, gamma, beta)
        assert out.shape == (batch, seq, d_model)
        assert jnp.allclose(out, ref, atol=1e-4, rtol=1e-4), (
            f"mismatch vs reference for config "
            f"{(vocab_size, d_model, max_seq_len, batch, seq)}")

    print("KERNEL_OK")
</pallas_src>

<mosaic_0001>
module attributes {stable_mosaic.version = 11 : i64} {
  func.func @kernel(%arg0: i32, %arg1: i32, %arg2: memref<16xi32, #tpu.memory_space<smem>>, %arg3: memref<1x8x1xf32, #tpu.memory_space<vmem>>, %arg4: memref<64x128xf32, #tpu.memory_space<any>>, %arg5: memref<8x128xf32, #tpu.memory_space<vmem>>, %arg6: memref<2x128xf32, #tpu.memory_space<vmem>>, %arg7: memref<1x128xf32, #tpu.memory_space<vmem>>, %arg8: memref<1x128xf32, #tpu.memory_space<vmem>>, %arg9: memref<1x8x128xf32, #tpu.memory_space<vmem>>, %arg10: memref<2x8x128xf32, #tpu.memory_space<vmem>>, %arg11: memref<2x!tpu.dma_semaphore, #tpu.memory_space<semaphore_mem>>) attributes {dimension_semantics = [#tpu.dimension_semantics<parallel>, #tpu.dimension_semantics<arbitrary>], iteration_bounds = array<i64: 2, 1>, scalar_prefetch = 1 : i64, scratch_operands = 2 : i64, tpu.core_type = #tpu.core_type<tc>, window_params = [{transform_indices = @transform_0, window_bounds = array<i64: 1, 8, 1>}, {}, {transform_indices = @transform_2, window_bounds = array<i64: 8, 128>}, {pipeline_mode = #tpu.pipeline_mode<synchronous>, transform_indices = @transform_3, window_bounds = array<i64: 2, 128>}, {pipeline_mode = #tpu.pipeline_mode<synchronous>, transform_indices = @transform_4, window_bounds = array<i64: 1, 128>}, {pipeline_mode = #tpu.pipeline_mode<synchronous>, transform_indices = @transform_5, window_bounds = array<i64: 1, 128>}, {transform_indices = @transform_6, window_bounds = array<i64: 1, 8, 128>}]} {
    %c2_i32 = arith.constant 2 : i32
    %c0_i32 = arith.constant 0 : i32
    %0 = arith.cmpi eq, %c2_i32, %c0_i32 : i32
    %c1_i32 = arith.constant 1 : i32
    %1 = arith.select %0, %c1_i32, %c2_i32 : i32
    %2 = arith.remsi %arg1, %1 : i32
    %c0_i32_0 = arith.constant 0 : i32
    %3 = arith.cmpi ne, %2, %c0_i32_0 : i32
    %c0_i32_1 = arith.constant 0 : i32
    %4 = arith.cmpi slt, %2, %c0_i32_1 : i32
    %c0_i32_2 = arith.constant 0 : i32
    %5 = arith.cmpi slt, %1, %c0_i32_2 : i32
    %6 = arith.xori %4, %5 : i1
    %7 = arith.andi %6, %3 : i1
    %8 = arith.addi %2, %1 : i32
    %9 = arith.select %7, %8, %2 : i32
    %c1_i32_3 = arith.constant 1 : i32
    %10 = arith.subi %c1_i32_3, %9 : i32
    %c0_i32_4 = arith.constant 0 : i32
    %11 = arith.cmpi eq, %arg1, %c0_i32_4 : i32
    %12 = arith.extui %11 : i1 to i32
    %c0_i32_5 = arith.constant 0 : i32
    %13 = arith.cmpi ne, %12, %c0_i32_5 : i32
    scf.if %13 {
      %c8_i32 = arith.constant 8 : i32
      %99 = arith.muli %arg0, %c8_i32 : i32
      %c0_i32_62 = arith.constant 0 : i32
      %100 = arith.addi %99, %c0_i32_62 : i32
      %c0_i32_63 = arith.constant 0 : i32
      %c8_i32_64 = arith.constant 8 : i32
      %101 = arith.muli %c0_i32_63, %c8_i32_64 : i32
      %c0_i32_65 = arith.constant 0 : i32
      %102 = arith.addi %101, %c0_i32_65 : i32
      %103 = arith.addi %100, %102 : i32
      %104 = arith.index_cast %103 : i32 to index
      %105 = memref.load %arg2[%104] : memref<16xi32, #tpu.memory_space<smem>>
      %c0_i32_66 = arith.constant 0 : i32
      %106 = tpu.memref_slice %arg4[%105, %c0_i32_66] : memref<64x128xf32, #tpu.memory_space<any>> -> memref<1x128xf32, #tpu.memory_space<any>>
      %c0_i32_67 = arith.constant 0 : i32
      %107 = tpu.memref_slice %arg10[%9, %102, %c0_i32_67] : memref<2x8x128xf32, #tpu.memory_space<vmem>> -> memref<1x1x128xf32, #tpu.memory_space<vmem>>
      %108 = tpu.memref_squeeze %107 : memref<1x1x128xf32, #tpu.memory_space<vmem>> -> memref<1x128xf32, #tpu.memory_space<vmem>>
      %109 = tpu.memref_slice %arg11[%9] : memref<2x!tpu.dma_semaphore, #tpu.memory_space<semaphore_mem>> -> memref<1x!tpu.dma_semaphore, #tpu.memory_space<semaphore_mem>>
      %110 = tpu.memref_squeeze %109 : memref<1x!tpu.dma_semaphore, #tpu.memory_space<semaphore_mem>> -> memref<!tpu.dma_semaphore, #tpu.memory_space<semaphore_mem>>
      tpu.enqueue_dma source(%106 : memref<1x128xf32, #tpu.memory_space<any>>) target(%108 : memref<1x128xf32, #tpu.memory_space<vmem>>) target_semaphore(%110 : memref<!tpu.dma_semaphore, #tpu.memory_space<semaphore_mem>>)
      %c1_i32_68 = arith.constant 1 : i32
      %111 = arith.addi %101, %c1_i32_68 : i32
      %112 = arith.addi %100, %111 : i32
      %113 = arith.index_cast %112 : i32 to index
      %114 = memref.load %arg2[%113] : memref<16xi32, #tpu.memory_space<smem>>
      %c0_i32_69 = arith.constant 0 : i32
      %115 = tpu.memref_slice %arg4[%114, %c0_i32_69] : memref<64x128xf32, #tpu.memory_space<any>> -> memref<1x128xf32, #tpu.memory_space<any>>
      %c0_i32_70 = arith.constant 0 : i32
      %116 = tpu.memref_slice %arg10[%9, %111, %c0_i32_70] : memref<2x8x128xf32, #tpu.memory_space<vmem>> -> memref<1x1x128xf32, #tpu.memory_space<vmem>>
      %117 = tpu.memref_squeeze %116 : memref<1x1x128xf32, #tpu.memory_space<vmem>> -> memref<1x128xf32, #tpu.memory_space<vmem>>
      %118 = tpu.memref_slice %arg11[%9] : memref<2x!tpu.dma_semaphore, #tpu.memory_space<semaphore_mem>> -> memref<1x!tpu.dma_semaphore, #tpu.memory_space<semaphore_mem>>
      %119 = tpu.memref_squeeze %118 : memref<1x!tpu.dma_semaphore, #tpu.memory_space<semaphore_mem>> -> memref<!tpu.dma_semaphore, #tpu.memory_space<semaphore_mem>>
      tpu.enqueue_dma source(%115 : memref<1x128xf32, #tpu.memory_space<any>>) target(%117 : memref<1x128xf32, #tpu.memory_space<vmem>>) target_semaphore(%119 : memref<!tpu.dma_semaphore, #tpu.memory_space<semaphore_mem>>)
      %c2_i32_71 = arith.constant 2 : i32
      %120 = arith.addi %101, %c2_i32_71 : i32
      %121 = arith.addi %100, %120 : i32
      %122 = arith.index_cast %121 : i32 to index
      %123 = memref.load %arg2[%122] : memref<16xi32, #tpu.memory_space<smem>>
      %c0_i32_72 = arith.constant 0 : i32
      %124 = tpu.memref_slice %arg4[%123, %c0_i32_72] : memref<64x128xf32, #tpu.memory_space<any>> -> memref<1x128xf32, #tpu.memory_space<any>>
      %c0_i32_73 = arith.constant 0 : i32
      %125 = tpu.memref_slice %arg10[%9, %120, %c0_i32_73] : memref<2x8x128xf32, #tpu.memory_space<vmem>> -> memref<1x1x128xf32, #tpu.memory_space<vmem>>
      %126 = tpu.memref_squeeze %125 : memref<1x1x128xf32, #tpu.memory_space<vmem>> -> memref<1x128xf32, #tpu.memory_space<vmem>>
      %127 = tpu.memref_slice %arg11[%9] : memref<2x!tpu.dma_semaphore, #tpu.memory_space<semaphore_mem>> -> memref<1x!tpu.dma_semaphore, #tpu.memory_space<semaphore_mem>>
      %128 = tpu.memref_squeeze %127 : memref<1x!tpu.dma_semaphore, #tpu.memory_space<semaphore_mem>> -> memref<!tpu.dma_semaphore, #tpu.memory_space<semaphore_mem>>
      tpu.enqueue_dma source(%124 : memref<1x128xf32, #tpu.memory_space<any>>) target(%126 : memref<1x128xf32, #tpu.memory_space<vmem>>) target_semaphore(%128 : memref<!tpu.dma_semaphore, #tpu.memory_space<semaphore_mem>>)
      %c3_i32 = arith.constant 3 : i32
      %129 = arith.addi %101, %c3_i32 : i32
      %130 = arith.addi %100, %129 : i32
      %131 = arith.index_cast %130 : i32 to index
      %132 = memref.load %arg2[%131] : memref<16xi32, #tpu.memory_space<smem>>
      %c0_i32_74 = arith.constant 0 : i32
      %133 = tpu.memref_slice %arg4[%132, %c0_i32_74] : memref<64x128xf32, #tpu.memory_space<any>> -> memref<1x128xf32, #tpu.memory_space<any>>
      %c0_i32_75 = arith.constant 0 : i32
      %134 = tpu.memref_slice %arg10[%9, %129, %c0_i32_75] : memref<2x8x128xf32, #tpu.memory_space<vmem>> -> memref<1x1x128xf32, #tpu.memory_space<vmem>>
      %135 = tpu.memref_squeeze %134 : memref<1x1x128xf32, #tpu.memory_space<vmem>> -> memref<1x128xf32, #tpu.memory_space<vmem>>
      %136 = tpu.memref_slice %arg11[%9] : memref<2x!tpu.dma_semaphore, #tpu.memory_space<semaphore_mem>> -> memref<1x!tpu.dma_semaphore, #tpu.memory_space<semaphore_mem>>
      %137 = tpu.memref_squeeze %136 : memref<1x!tpu.dma_semaphore, #tpu.memory_space<semaphore_mem>> -> memref<!tpu.dma_semaphore, #tpu.memory_space<semaphore_mem>>
      tpu.enqueue_dma source(%133 : memref<1x128xf32, #tpu.memory_space<any>>) target(%135 : memref<1x128xf32, #tpu.memory_space<vmem>>) target_semaphore(%137 : memref<!tpu.dma_semaphore, #tpu.memory_space<semaphore_mem>>)
      %c4_i32 = arith.constant 4 : i32
      %138 = arith.addi %101, %c4_i32 : i32
      %139 = arith.addi %100, %138 : i32
      %140 = arith.index_cast %139 : i32 to index
      %141 = memref.load %arg2[%140] : memref<16xi32, #tpu.memory_space<smem>>
      %c0_i32_76 = arith.constant 0 : i32
      %142 = tpu.memref_slice %arg4[%141, %c0_i32_76] : memref<64x128xf32, #tpu.memory_space<any>> -> memref<1x128xf32, #tpu.memory_space<any>>
      %c0_i32_77 = arith.constant 0 : i32
      %143 = tpu.memref_slice %arg10[%9, %138, %c0_i32_77] : memref<2x8x128xf32, #tpu.memory_space<vmem>> -> memref<1x1x128xf32, #tpu.memory_space<vmem>>
      %144 = tpu.memref_squeeze %143 : memref<1x1x128xf32, #tpu.memory_space<vmem>> -> memref<1x128xf32, #tpu.memory_space<vmem>>
      %145 = tpu.memref_slice %arg11[%9] : memref<2x!tpu.dma_semaphore, #tpu.memory_space<semaphore_mem>> -> memref<1x!tpu.dma_semaphore, #tpu.memory_space<semaphore_mem>>
      %146 = tpu.memref_squeeze %145 : memref<1x!tpu.dma_semaphore, #tpu.memory_space<semaphore_mem>> -> memref<!tpu.dma_semaphore, #tpu.memory_space<semaphore_mem>>
      tpu.enqueue_dma source(%142 : memref<1x128xf32, #tpu.memory_space<any>>) target(%144 : memref<1x128xf32, #tpu.memory_space<vmem>>) target_semaphore(%146 : memref<!tpu.dma_semaphore, #tpu.memory_space<semaphore_mem>>)
      %c5_i32 = arith.constant 5 : i32
      %147 = arith.addi %101, %c5_i32 : i32
      %148 = arith.addi %100, %147 : i32
      %149 = arith.index_cast %148 : i32 to index
      %150 = memref.load %arg2[%149] : memref<16xi32, #tpu.memory_space<smem>>
      %c0_i32_78 = arith.constant 0 : i32
      %151 = tpu.memref_slice %arg4[%150, %c0_i32_78] : memref<64x128xf32, #tpu.memory_space<any>> -> memref<1x128xf32, #tpu.memory_space<any>>
      %c0_i32_79 = arith.constant 0 : i32
      %152 = tpu.memref_slice %arg10[%9, %147, %c0_i32_79] : memref<2x8x128xf32, #tpu.memory_space<vmem>> -> memref<1x1x128xf32, #tpu.memory_space<vmem>>
      %153 = tpu.memref_squeeze %152 : memref<1x1x128xf32, #tpu.memory_space<vmem>> -> memref<1x128xf32, #tpu.memory_space<vmem>>
      %154 = tpu.memref_slice %arg11[%9] : memref<2x!tpu.dma_semaphore, #tpu.memory_space<semaphore_mem>> -> memref<1x!tpu.dma_semaphore, #tpu.memory_space<semaphore_mem>>
      %155 = tpu.memref_squeeze %154 : memref<1x!tpu.dma_semaphore, #tpu.memory_space<semaphore_mem>> -> memref<!tpu.dma_semaphore, #tpu.memory_space<semaphore_mem>>
      tpu.enqueue_dma source(%151 : memref<1x128xf32, #tpu.memory_space<any>>) target(%153 : memref<1x128xf32, #tpu.memory_space<vmem>>) target_semaphore(%155 : memref<!tpu.dma_semaphore, #tpu.memory_space<semaphore_mem>>)
      %c6_i32 = arith.constant 6 : i32
      %156 = arith.addi %101, %c6_i32 : i32
      %157 = arith.addi %100, %156 : i32
      %158 = arith.index_cast %157 : i32 to index
      %159 = memref.load %arg2[%158] : memref<16xi32, #tpu.memory_space<smem>>
      %c0_i32_80 = arith.constant 0 : i32
      %160 = tpu.memref_slice %arg4[%159, %c0_i32_80] : memref<64x128xf32, #tpu.memory_space<any>> -> memref<1x128xf32, #tpu.memory_space<any>>
      %c0_i32_81 = arith.constant 0 : i32
      %161 = tpu.memref_slice %arg10[%9, %156, %c0_i32_81] : memref<2x8x128xf32, #tpu.memory_space<vmem>> -> memref<1x1x128xf32, #tpu.memory_space<vmem>>
      %162 = tpu.memref_squeeze %161 : memref<1x1x128xf32, #tpu.memory_space<vmem>> -> memref<1x128xf32, #tpu.memory_space<vmem>>
      %163 = tpu.memref_slice %arg11[%9] : memref<2x!tpu.dma_semaphore, #tpu.memory_space<semaphore_mem>> -> memref<1x!tpu.dma_semaphore, #tpu.memory_space<semaphore_mem>>
      %164 = tpu.memref_squeeze %163 : memref<1x!tpu.dma_semaphore, #tpu.memory_space<semaphore_mem>> -> memref<!tpu.dma_semaphore, #tpu.memory_space<semaphore_mem>>
      tpu.enqueue_dma source(%160 : memref<1x128xf32, #tpu.memory_space<any>>) target(%162 : memref<1x128xf32, #tpu.memory_space<vmem>>) target_semaphore(%164 : memref<!tpu.dma_semaphore, #tpu.memory_space<semaphore_mem>>)
      %c7_i32 = arith.constant 7 : i32
      %165 = arith.addi %101, %c7_i32 : i32
      %166 = arith.addi %100, %165 : i32
      %167 = arith.index_cast %166 : i32 to index
      %168 = memref.load %arg2[%167] : memref<16xi32, #tpu.memory_space<smem>>
      %c0_i32_82 = arith.constant 0 : i32
      %169 = tpu.memref_slice %arg4[%168, %c0_i32_82] : memref<64x128xf32, #tpu.memory_space<any>> -> memref<1x128xf32, #tpu.memory_space<any>>
      %c0_i32_83 = arith.constant 0 : i32
      %170 = tpu.memref_slice %arg10[%9, %165, %c0_i32_83] : memref<2x8x128xf32, #tpu.memory_space<vmem>> -> memref<1x1x128xf32, #tpu.memory_space<vmem>>
      %171 = tpu.memref_squeeze %170 : memref<1x1x128xf32, #tpu.memory_space<vmem>> -> memref<1x128xf32, #tpu.memory_space<vmem>>
      %172 = tpu.memref_slice %arg11[%9] : memref<2x!tpu.dma_semaphore, #tpu.memory_space<semaphore_mem>> -> memref<1x!tpu.dma_semaphore, #tpu.memory_space<semaphore_mem>>
      %173 = tpu.memref_squeeze %172 : memref<1x!tpu.dma_semaphore, #tpu.memory_space<semaphore_mem>> -> memref<!tpu.dma_semaphore, #tpu.memory_space<semaphore_mem>>
      tpu.enqueue_dma source(%169 : memref<1x128xf32, #tpu.memory_space<any>>) target(%171 : memref<1x128xf32, #tpu.memory_space<vmem>>) target_semaphore(%173 : memref<!tpu.dma_semaphore, #tpu.memory_space<semaphore_mem>>)
      %c1_i32_84 = arith.constant 1 : i32
    } else {
    }
    %c1_i32_6 = arith.constant 1 : i32
    %14 = arith.addi %arg1, %c1_i32_6 : i32
    %c1_i32_7 = arith.constant 1 : i32
    %15 = arith.cmpi slt, %14, %c1_i32_7 : i32
    %16 = arith.extui %15 : i1 to i32
    %c0_i32_8 = arith.constant 0 : i32
    %17 = arith.cmpi ne, %16, %c0_i32_8 : i32
    scf.if %17 {
      %c1_i32_62 = arith.constant 1 : i32
      %99 = arith.addi %arg1, %c1_i32_62 : i32
      %c8_i32 = arith.constant 8 : i32
      %100 = arith.muli %arg0, %c8_i32 : i32
      %c8_i32_63 = arith.constant 8 : i32
      %101 = arith.muli %99, %c8_i32_63 : i32
      %102 = arith.addi %100, %101 : i32
      %c0_i32_64 = arith.constant 0 : i32
      %c8_i32_65 = arith.constant 8 : i32
      %103 = arith.muli %c0_i32_64, %c8_i32_65 : i32
      %c0_i32_66 = arith.constant 0 : i32
      %104 = arith.addi %103, %c0_i32_66 : i32
      %105 = arith.addi %102, %104 : i32
      %106 = arith.index_cast %105 : i32 to index
      %107 = memref.load %arg2[%106] : memref<16xi32, #tpu.memory_space<smem>>
      %c0_i32_67 = arith.constant 0 : i32
      %108 = tpu.memref_slice %arg4[%107, %c0_i32_67] : memref<64x128xf32, #tpu.memory_space<any>> -> memref<1x128xf32, #tpu.memory_space<any>>
      %c0_i32_68 = arith.constant 0 : i32
      %109 = tpu.memref_slice %arg10[%10, %104, %c0_i32_68] : memref<2x8x128xf32, #tpu.memory_space<vmem>> -> memref<1x1x128xf32, #tpu.memory_space<vmem>>
      %110 = tpu.memref_squeeze %109 : memref<1x1x128xf32, #tpu.memory_space<vmem>> -> memref<1x128xf32, #tpu.memory_space<vmem>>
      %111 = tpu.memref_slice %arg11[%10] : memref<2x!tpu.dma_semaphore, #tpu.memory_space<semaphore_mem>> -> memref<1x!tpu.dma_semaphore, #tpu.memory_space<semaphore_mem>>
      %112 = tpu.memref_squeeze %111 : memref<1x!tpu.dma_semaphore, #tpu.memory_space<semaphore_mem>> -> memref<!tpu.dma_semaphore, #tpu.memory_space<semaphore_mem>>
      tpu.enqueue_dma source(%108 : memref<1x128xf32, #tpu.memory_space<any>>) target(%110 : memref<1x128xf32, #tpu.memory_space<vmem>>) target_semaphore(%112 : memref<!tpu.dma_semaphore, #tpu.memory_space<semaphore_mem>>)
      %c1_i32_69 = arith.constant 1 : i32
      %113 = arith.addi %103, %c1_i32_69 : i32
      %114 = arith.addi %102, %113 : i32
      %115 = arith.index_cast %114 : i32 to index
      %116 = memref.load %arg2[%115] : memref<16xi32, #tpu.memory_space<smem>>
      %c0_i32_70 = arith.constant 0 : i32
      %117 = tpu.memref_slice %arg4[%116, %c0_i32_70] : memref<64x128xf32, #tpu.memory_space<any>> -> memref<1x128xf32, #tpu.memory_space<any>>
      %c0_i32_71 = arith.constant 0 : i32
      %118 = tpu.memref_slice %arg10[%10, %113, %c0_i32_71] : memref<2x8x128xf32, #tpu.memory_space<vmem>> -> memref<1x1x128xf32, #tpu.memory_space<vmem>>
      %119 = tpu.memref_squeeze %118 : memref<1x1x128xf32, #tpu.memory_space<vmem>> -> memref<1x128xf32, #tpu.memory_space<vmem>>
      %120 = tpu.memref_slice %arg11[%10] : memref<2x!tpu.dma_semaphore, #tpu.memory_space<semaphore_mem>> -> memref<1x!tpu.dma_semaphore, #tpu.memory_space<semaphore_mem>>
      %121 = tpu.memref_squeeze %120 : memref<1x!tpu.dma_semaphore, #tpu.memory_space<semaphore_mem>> -> memref<!tpu.dma_semaphore, #tpu.memory_space<semaphore_mem>>
      tpu.enqueue_dma source(%117 : memref<1x128xf32, #tpu.memory_space<any>>) target(%119 : memref<1x128xf32, #tpu.memory_space<vmem>>) target_semaphore(%121 : memref<!tpu.dma_semaphore, #tpu.memory_space<semaphore_mem>>)
      %c2_i32_72 = arith.constant 2 : i32
      %122 = arith.addi %103, %c2_i32_72 : i32
      %123 = arith.addi %102, %122 : i32
      %124 = arith.index_cast %123 : i32 to index
      %125 = memref.load %arg2[%124] : memref<16xi32, #tpu.memory_space<smem>>
      %c0_i32_73 = arith.constant 0 : i32
      %126 = tpu.memref_slice %arg4[%125, %c0_i32_73] : memref<64x128xf32, #tpu.memory_space<any>> -> memref<1x128xf32, #tpu.memory_space<any>>
      %c0_i32_74 = arith.constant 0 : i32
      %127 = tpu.memref_slice %arg10[%10, %122, %c0_i32_74] : memref<2x8x128xf32, #tpu.memory_space<vmem>> -> memref<1x1x128xf32, #tpu.memory_space<vmem>>
      %128 = tpu.memref_squeeze %127 : memref<1x1x128xf32, #tpu.memory_space<vmem>> -> memref<1x128xf32, #tpu.memory_space<vmem>>
      %129 = tpu.memref_slice %arg11[%10] : memref<2x!tpu.dma_semaphore, #tpu.memory_space<semaphore_mem>> -> memref<1x!tpu.dma_semaphore, #tpu.memory_space<semaphore_mem>>
      %130 = tpu.memref_squeeze %129 : memref<1x!tpu.dma_semaphore, #tpu.memory_space<semaphore_mem>> -> memref<!tpu.dma_semaphore, #tpu.memory_space<semaphore_mem>>
      tpu.enqueue_dma source(%126 : memref<1x128xf32, #tpu.memory_space<any>>) target(%128 : memref<1x128xf32, #tpu.memory_space<vmem>>) target_semaphore(%130 : memref<!tpu.dma_semaphore, #tpu.memory_space<semaphore_mem>>)
      %c3_i32 = arith.constant 3 : i32
      %131 = arith.addi %103, %c3_i32 : i32
      %132 = arith.addi %102, %131 : i32
      %133 = arith.index_cast %132 : i32 to index
      %134 = memref.load %arg2[%133] : memref<16xi32, #tpu.memory_space<smem>>
      %c0_i32_75 = arith.constant 0 : i32
      %135 = tpu.memref_slice %arg4[%134, %c0_i32_75] : memref<64x128xf32, #tpu.memory_space<any>> -> memref<1x128xf32, #tpu.memory_space<any>>
      %c0_i32_76 = arith.constant 0 : i32
      %136 = tpu.memref_slice %arg10[%10, %131, %c0_i32_76] : memref<2x8x128xf32, #tpu.memory_space<vmem>> -> memref<1x1x128xf32, #tpu.memory_space<vmem>>
      %137 = tpu.memref_squeeze %136 : memref<1x1x128xf32, #tpu.memory_space<vmem>> -> memref<1x128xf32, #tpu.memory_space<vmem>>
      %138 = tpu.memref_slice %arg11[%10] : memref<2x!tpu.dma_semaphore, #tpu.memory_space<semaphore_mem>> -> memref<1x!tpu.dma_semaphore, #tpu.memory_space<semaphore_mem>>
      %139 = tpu.memref_squeeze %138 : memref<1x!tpu.dma_semaphore, #tpu.memory_space<semaphore_mem>> -> memref<!tpu.dma_semaphore, #tpu.memory_space<semaphore_mem>>
      tpu.enqueue_dma source(%135 : memref<1x128xf32, #tpu.memory_space<any>>) target(%137 : memref<1x128xf32, #tpu.memory_space<vmem>>) target_semaphore(%139 : memref<!tpu.dma_semaphore, #tpu.memory_space<semaphore_mem>>)
      %c4_i32 = arith.constant 4 : i32
      %140 = arith.addi %103, %c4_i32 : i32
      %141 = arith.addi %102, %140 : i32
      %142 = arith.index_cast %141 : i32 to index
      %143 = memref.load %arg2[%142] : memref<16xi32, #tpu.memory_space<smem>>
      %c0_i32_77 = arith.constant 0 : i32
      %144 = tpu.memref_slice %arg4[%143, %c0_i32_77] : memref<64x128xf32, #tpu.memory_space<any>> -> memref<1x128xf32, #tpu.memory_space<any>>
      %c0_i32_78 = arith.constant 0 : i32
      %145 = tpu.memref_slice %arg10[%10, %140, %c0_i32_78] : memref<2x8x128xf32, #tpu.memory_space<vmem>> -> memref<1x1x128xf32, #tpu.memory_space<vmem>>
      %146 = tpu.memref_squeeze %145 : memref<1x1x128xf32, #tpu.memory_space<vmem>> -> memref<1x128xf32, #tpu.memory_space<vmem>>
      %147 = tpu.memref_slice %arg11[%10] : memref<2x!tpu.dma_semaphore, #tpu.memory_space<semaphore_mem>> -> memref<1x!tpu.dma_semaphore, #tpu.memory_space<semaphore_mem>>
      %148 = tpu.memref_squeeze %147 : memref<1x!tpu.dma_semaphore, #tpu.memory_space<semaphore_mem>> -> memref<!tpu.dma_semaphore, #tpu.memory_space<semaphore_mem>>
      tpu.enqueue_dma source(%144 : memref<1x128xf32, #tpu.memory_space<any>>) target(%146 : memref<1x128xf32, #tpu.memory_space<vmem>>) target_semaphore(%148 : memref<!tpu.dma_semaphore, #tpu.memory_space<semaphore_mem>>)
      %c5_i32 = arith.constant 5 : i32
      %149 = arith.addi %103, %c5_i32 : i32
      %150 = arith.addi %102, %149 : i32
      %151 = arith.index_cast %150 : i32 to index
      %152 = memref.load %arg2[%151] : memref<16xi32, #tpu.memory_space<smem>>
      %c0_i32_79 = arith.constant 0 : i32
      %153 = tpu.memref_slice %arg4[%152, %c0_i32_79] : memref<64x128xf32, #tpu.memory_space<any>> -> memref<1x128xf32, #tpu.memory_space<any>>
      %c0_i32_80 = arith.constant 0 : i32
      %154 = tpu.memref_slice %arg10[%10, %149, %c0_i32_80] : memref<2x8x128xf32, #tpu.memory_space<vmem>> -> memref<1x1x128xf32, #tpu.memory_space<vmem>>
      %155 = tpu.memref_squeeze %154 : memref<1x1x128xf32, #tpu.memory_space<vmem>> -> memref<1x128xf32, #tpu.memory_space<vmem>>
      %156 = tpu.memref_slice %arg11[%10] : memref<2x!tpu.dma_semaphore, #tpu.memory_space<semaphore_mem>> -> memref<1x!tpu.dma_semaphore, #tpu.memory_space<semaphore_mem>>
      %157 = tpu.memref_squeeze %156 : memref<1x!tpu.dma_semaphore, #tpu.memory_space<semaphore_mem>> -> memref<!tpu.dma_semaphore, #tpu.memory_space<semaphore_mem>>
      tpu.enqueue_dma source(%153 : memref<1x128xf32, #tpu.memory_space<any>>) target(%155 : memref<1x128xf32, #tpu.memory_space<vmem>>) target_semaphore(%157 : memref<!tpu.dma_semaphore, #tpu.memory_space<semaphore_mem>>)
      %c6_i32 = arith.constant 6 : i32
      %158 = arith.addi %103, %c6_i32 : i32
      %159 = arith.addi %102, %158 : i32
      %160 = arith.index_cast %159 : i32 to index
      %161 = memref.load %arg2[%160] : memref<16xi32, #tpu.memory_space<smem>>
      %c0_i32_81 = arith.constant 0 : i32
      %162 = tpu.memref_slice %arg4[%161, %c0_i32_81] : memref<64x128xf32, #tpu.memory_space<any>> -> memref<1x128xf32, #tpu.memory_space<any>>
      %c0_i32_82 = arith.constant 0 : i32
      %163 = tpu.memref_slice %arg10[%10, %158, %c0_i32_82] : memref<2x8x128xf32, #tpu.memory_space<vmem>> -> memref<1x1x128xf32, #tpu.memory_space<vmem>>
      %164 = tpu.memref_squeeze %163 : memref<1x1x128xf32, #tpu.memory_space<vmem>> -> memref<1x128xf32, #tpu.memory_space<vmem>>
      %165 = tpu.memref_slice %arg11[%10] : memref<2x!tpu.dma_semaphore, #tpu.memory_space<semaphore_mem>> -> memref<1x!tpu.dma_semaphore, #tpu.memory_space<semaphore_mem>>
      %166 = tpu.memref_squeeze %165 : memref<1x!tpu.dma_semaphore, #tpu.memory_space<semaphore_mem>> -> memref<!tpu.dma_semaphore, #tpu.memory_space<semaphore_mem>>
      tpu.enqueue_dma source(%162 : memref<1x128xf32, #tpu.memory_space<any>>) target(%164 : memref<1x128xf32, #tpu.memory_space<vmem>>) target_semaphore(%166 : memref<!tpu.dma_semaphore, #tpu.memory_space<semaphore_mem>>)
      %c7_i32 = arith.constant 7 : i32
      %167 = arith.addi %103, %c7_i32 : i32
      %168 = arith.addi %102, %167 : i32
      %169 = arith.index_cast %168 : i32 to index
      %170 = memref.load %arg2[%169] : memref<16xi32, #tpu.memory_space<smem>>
      %c0_i32_83 = arith.constant 0 : i32
      %171 = tpu.memref_slice %arg4[%170, %c0_i32_83] : memref<64x128xf32, #tpu.memory_space<any>> -> memref<1x128xf32, #tpu.memory_space<any>>
      %c0_i32_84 = arith.constant 0 : i32
      %172 = tpu.memref_slice %arg10[%10, %167, %c0_i32_84] : memref<2x8x128xf32, #tpu.memory_space<vmem>> -> memref<1x1x128xf32, #tpu.memory_space<vmem>>
      %173 = tpu.memref_squeeze %172 : memref<1x1x128xf32, #tpu.memory_space<vmem>> -> memref<1x128xf32, #tpu.memory_space<vmem>>
      %174 = tpu.memref_slice %arg11[%10] : memref<2x!tpu.dma_semaphore, #tpu.memory_space<semaphore_mem>> -> memref<1x!tpu.dma_semaphore, #tpu.memory_space<semaphore_mem>>
      %175 = tpu.memref_squeeze %174 : memref<1x!tpu.dma_semaphore, #tpu.memory_space<semaphore_mem>> -> memref<!tpu.dma_semaphore, #tpu.memory_space<semaphore_mem>>
      tpu.enqueue_dma source(%171 : memref<1x128xf32, #tpu.memory_space<any>>) target(%173 : memref<1x128xf32, #tpu.memory_space<vmem>>) target_semaphore(%175 : memref<!tpu.dma_semaphore, #tpu.memory_space<semaphore_mem>>)
      %c1_i32_85 = arith.constant 1 : i32
    } else {
    }
    %c0 = arith.constant 0 : index
    %c0_9 = arith.constant 0 : index
    %18 = vector.load %arg6[%c0, %c0_9] : memref<2x128xf32, #tpu.memory_space<vmem>>, vector<1x128xf32>
    %c1 = arith.constant 1 : index
    %c0_10 = arith.constant 0 : index
    %19 = vector.load %arg6[%c1, %c0_10] : memref<2x128xf32, #tpu.memory_space<vmem>>, vector<1x128xf32>
    %20 = arith.subf %19, %18 : vector<1x128xf32>
    %c0_11 = arith.constant 0 : index
    %c0_12 = arith.constant 0 : index
    %21 = vector.load %arg5[%c0_11, %c0_12] : memref<8x128xf32, #tpu.memory_space<vmem>>, vector<8x128xf32>
    %22 = vector.broadcast %18 : vector<1x128xf32> to vector<8x128xf32>
    %23 = arith.addf %21, %22 : vector<8x128xf32>
    %c0_13 = arith.constant 0 : index
    %c0_14 = arith.constant 0 : index
    %c0_15 = arith.constant 0 : index
    %24 = vector.load %arg3[%c0_13, %c0_14, %c0_15] : memref<1x8x1xf32, #tpu.memory_space<vmem>>, vector<1x8x1xf32>
    %25 = vector.shape_cast %24 : vector<1x8x1xf32> to vector<8x1xf32>
    %26 = vector.broadcast %25 : vector<8x1xf32> to vector<8x128xf32>
    %27 = vector.broadcast %20 : vector<1x128xf32> to vector<8x128xf32>
    %28 = arith.mulf %26, %27 : vector<8x128xf32>
    %29 = arith.addf %23, %28 : vector<8x128xf32>
    %c0_i32_16 = arith.constant 0 : i32
    %c0_i32_17 = arith.constant 0 : i32
    %c0_i32_18 = arith.constant 0 : i32
    %30 = tpu.memref_slice %arg4[%c0_i32_17, %c0_i32_18] : memref<64x128xf32, #tpu.memory_space<any>> -> memref<1x128xf32, #tpu.memory_space<any>>
    %c0_i32_19 = arith.constant 0 : i32
    %c0_i32_20 = arith.constant 0 : i32
    %31 = tpu.memref_slice %arg10[%9, %c0_i32_19, %c0_i32_20] : memref<2x8x128xf32, #tpu.memory_space<vmem>> -> memref<1x1x128xf32, #tpu.memory_space<vmem>>
    %32 = tpu.memref_squeeze %31 : memref<1x1x128xf32, #tpu.memory_space<vmem>> -> memref<1x128xf32, #tpu.memory_space<vmem>>
    %33 = tpu.memref_slice %arg11[%9] : memref<2x!tpu.dma_semaphore, #tpu.memory_space<semaphore_mem>> -> memref<1x!tpu.dma_semaphore, #tpu.memory_space<semaphore_mem>>
    %34 = tpu.memref_squeeze %33 : memref<1x!tpu.dma_semaphore, #tpu.memory_space<semaphore_mem>> -> memref<!tpu.dma_semaphore, #tpu.memory_space<semaphore_mem>>
    tpu.wait_dma2 semaphore(%34 : memref<!tpu.dma_semaphore, #tpu.memory_space<semaphore_mem>>) src(%30 : memref<1x128xf32, #tpu.memory_space<any>>) dst(%32 : memref<1x128xf32, #tpu.memory_space<vmem>>)
    %c0_i32_21 = arith.constant 0 : i32
    %c0_i32_22 = arith.constant 0 : i32
    %35 = tpu.memref_slice %arg4[%c0_i32_21, %c0_i32_22] : memref<64x128xf32, #tpu.memory_space<any>> -> memref<1x128xf32, #tpu.memory_space<any>>
    %c0_i32_23 = arith.constant 0 : i32
    %c0_i32_24 = arith.constant 0 : i32
    %36 = tpu.memref_slice %arg10[%9, %c0_i32_23, %c0_i32_24] : memref<2x8x128xf32, #tpu.memory_space<vmem>> -> memref<1x1x128xf32, #tpu.memory_space<vmem>>
    %37 = tpu.memref_squeeze %36 : memref<1x1x128xf32, #tpu.memory_space<vmem>> -> memref<1x128xf32, #tpu.memory_space<vmem>>
    %38 = tpu.memref_slice %arg11[%9] : memref<2x!tpu.dma_semaphore, #tpu.memory_space<semaphore_mem>> -> memref<1x!tpu.dma_semaphore, #tpu.memory_space<semaphore_mem>>
    %39 = tpu.memref_squeeze %38 : memref<1x!tpu.dma_semaphore, #tpu.memory_space<semaphore_mem>> -> memref<!tpu.dma_semaphore, #tpu.memory_space<semaphore_mem>>
    tpu.wait_dma2 semaphore(%39 : memref<!tpu.dma_semaphore, #tpu.memory_space<semaphore_mem>>) src(%35 : memref<1x128xf32, #tpu.memory_space<any>>) dst(%37 : memref<1x128xf32, #tpu.memory_space<vmem>>)
    %c0_i32_25 = arith.constant 0 : i32
    %c0_i32_26 = arith.constant 0 : i32
    %40 = tpu.memref_slice %arg4[%c0_i32_25, %c0_i32_26] : memref<64x128xf32, #tpu.memory_space<any>> -> memref<1x128xf32, #tpu.memory_space<any>>
    %c0_i32_27 = arith.constant 0 : i32
    %c0_i32_28 = arith.constant 0 : i32
    %41 = tpu.memref_slice %arg10[%9, %c0_i32_27, %c0_i32_28] : memref<2x8x128xf32, #tpu.memory_space<vmem>> -> memref<1x1x128xf32, #tpu.memory_space<vmem>>
    %42 = tpu.memref_squeeze %41 : memref<1x1x128xf32, #tpu.memory_space<vmem>> -> memref<1x128xf32, #tpu.memory_space<vmem>>
    %43 = tpu.memref_slice %arg11[%9] : memref<2x!tpu.dma_semaphore, #tpu.memory_space<semaphore_mem>> -> memref<1x!tpu.dma_semaphore, #tpu.memory_space<semaphore_mem>>
    %44 = tpu.memref_squeeze %43 : memref<1x!tpu.dma_semaphore, #tpu.memory_space<semaphore_mem>> -> memref<!tpu.dma_semaphore, #tpu.memory_space<semaphore_mem>>
    tpu.wait_dma2 semaphore(%44 : memref<!tpu.dma_semaphore, #tpu.memory_space<semaphore_mem>>) src(%40 : memref<1x128xf32, #tpu.memory_space<any>>) dst(%42 : memref<1x128xf32, #tpu.memory_space<vmem>>)
    %c0_i32_29 = arith.constant 0 : i32
    %c0_i32_30 = arith.constant 0 : i32
    %45 = tpu.memref_slice %arg4[%c0_i32_29, %c0_i32_30] : memref<64x128xf32, #tpu.memory_space<any>> -> memref<1x128xf32, #tpu.memory_space<any>>
    %c0_i32_31 = arith.constant 0 : i32
    %c0_i32_32 = arith.constant 0 : i32
    %46 = tpu.memref_slice %arg10[%9, %c0_i32_31, %c0_i32_32] : memref<2x8x128xf32, #tpu.memory_space<vmem>> -> memref<1x1x128xf32, #tpu.memory_space<vmem>>
    %47 = tpu.memref_squeeze %46 : memref<1x1x128xf32, #tpu.memory_space<vmem>> -> memref<1x128xf32, #tpu.memory_space<vmem>>
    %48 = tpu.memref_slice %arg11[%9] : memref<2x!tpu.dma_semaphore, #tpu.memory_space<semaphore_mem>> -> memref<1x!tpu.dma_semaphore, #tpu.memory_space<semaphore_mem>>
    %49 = tpu.memref_squeeze %48 : memref<1x!tpu.dma_semaphore, #tpu.memory_space<semaphore_mem>> -> memref<!tpu.dma_semaphore, #tpu.memory_space<semaphore_mem>>
    tpu.wait_dma2 semaphore(%49 : memref<!tpu.dma_semaphore, #tpu.memory_space<semaphore_mem>>) src(%45 : memref<1x128xf32, #tpu.memory_space<any>>) dst(%47 : memref<1x128xf32, #tpu.memory_space<vmem>>)
    %c0_i32_33 = arith.constant 0 : i32
    %c0_i32_34 = arith.constant 0 : i32
    %50 = tpu.memref_slice %arg4[%c0_i32_33, %c0_i32_34] : memref<64x128xf32, #tpu.memory_space<any>> -> memref<1x128xf32, #tpu.memory_space<any>>
    %c0_i32_35 = arith.constant 0 : i32
    %c0_i32_36 = arith.constant 0 : i32
    %51 = tpu.memref_slice %arg10[%9, %c0_i32_35, %c0_i32_36] : memref<2x8x128xf32, #tpu.memory_space<vmem>> -> memref<1x1x128xf32, #tpu.memory_space<vmem>>
    %52 = tpu.memref_squeeze %51 : memref<1x1x128xf32, #tpu.memory_space<vmem>> -> memref<1x128xf32, #tpu.memory_space<vmem>>
    %53 = tpu.memref_slice %arg11[%9] : memref<2x!tpu.dma_semaphore, #tpu.memory_space<semaphore_mem>> -> memref<1x!tpu.dma_semaphore, #tpu.memory_space<semaphore_mem>>
    %54 = tpu.memref_squeeze %53 : memref<1x!tpu.dma_semaphore, #tpu.memory_space<semaphore_mem>> -> memref<!tpu.dma_semaphore, #tpu.memory_space<semaphore_mem>>
    tpu.wait_dma2 semaphore(%54 : memref<!tpu.dma_semaphore, #tpu.memory_space<semaphore_mem>>) src(%50 : memref<1x128xf32, #tpu.memory_space<any>>) dst(%52 : memref<1x128xf32, #tpu.memory_space<vmem>>)
    %c0_i32_37 = arith.constant 0 : i32
    %c0_i32_38 = arith.constant 0 : i32
    %55 = tpu.memref_slice %arg4[%c0_i32_37, %c0_i32_38] : memref<64x128xf32, #tpu.memory_space<any>> -> memref<1x128xf32, #tpu.memory_space<any>>
    %c0_i32_39 = arith.constant 0 : i32
    %c0_i32_40 = arith.constant 0 : i32
    %56 = tpu.memref_slice %arg10[%9, %c0_i32_39, %c0_i32_40] : memref<2x8x128xf32, #tpu.memory_space<vmem>> -> memref<1x1x128xf32, #tpu.memory_space<vmem>>
    %57 = tpu.memref_squeeze %56 : memref<1x1x128xf32, #tpu.memory_space<vmem>> -> memref<1x128xf32, #tpu.memory_space<vmem>>
    %58 = tpu.memref_slice %arg11[%9] : memref<2x!tpu.dma_semaphore, #tpu.memory_space<semaphore_mem>> -> memref<1x!tpu.dma_semaphore, #tpu.memory_space<semaphore_mem>>
    %59 = tpu.memref_squeeze %58 : memref<1x!tpu.dma_semaphore, #tpu.memory_space<semaphore_mem>> -> memref<!tpu.dma_semaphore, #tpu.memory_space<semaphore_mem>>
    tpu.wait_dma2 semaphore(%59 : memref<!tpu.dma_semaphore, #tpu.memory_space<semaphore_mem>>) src(%55 : memref<1x128xf32, #tpu.memory_space<any>>) dst(%57 : memref<1x128xf32, #tpu.memory_space<vmem>>)
    %c0_i32_41 = arith.constant 0 : i32
    %c0_i32_42 = arith.constant 0 : i32
    %60 = tpu.memref_slice %arg4[%c0_i32_41, %c0_i32_42] : memref<64x128xf32, #tpu.memory_space<any>> -> memref<1x128xf32, #tpu.memory_space<any>>
    %c0_i32_43 = arith.constant 0 : i32
    %c0_i32_44 = arith.constant 0 : i32
    %61 = tpu.memref_slice %arg10[%9, %c0_i32_43, %c0_i32_44] : memref<2x8x128xf32, #tpu.memory_space<vmem>> -> memref<1x1x128xf32, #tpu.memory_space<vmem>>
    %62 = tpu.memref_squeeze %61 : memref<1x1x128xf32, #tpu.memory_space<vmem>> -> memref<1x128xf32, #tpu.memory_space<vmem>>
    %63 = tpu.memref_slice %arg11[%9] : memref<2x!tpu.dma_semaphore, #tpu.memory_space<semaphore_mem>> -> memref<1x!tpu.dma_semaphore, #tpu.memory_space<semaphore_mem>>
    %64 = tpu.memref_squeeze %63 : memref<1x!tpu.dma_semaphore, #tpu.memory_space<semaphore_mem>> -> memref<!tpu.dma_semaphore, #tpu.memory_space<semaphore_mem>>
    tpu.wait_dma2 semaphore(%64 : memref<!tpu.dma_semaphore, #tpu.memory_space<semaphore_mem>>) src(%60 : memref<1x128xf32, #tpu.memory_space<any>>) dst(%62 : memref<1x128xf32, #tpu.memory_space<vmem>>)
    %c0_i32_45 = arith.constant 0 : i32
    %c0_i32_46 = arith.constant 0 : i32
    %65 = tpu.memref_slice %arg4[%c0_i32_45, %c0_i32_46] : memref<64x128xf32, #tpu.memory_space<any>> -> memref<1x128xf32, #tpu.memory_space<any>>
    %c0_i32_47 = arith.constant 0 : i32
    %c0_i32_48 = arith.constant 0 : i32
    %66 = tpu.memref_slice %arg10[%9, %c0_i32_47, %c0_i32_48] : memref<2x8x128xf32, #tpu.memory_space<vmem>> -> memref<1x1x128xf32, #tpu.memory_space<vmem>>
    %67 = tpu.memref_squeeze %66 : memref<1x1x128xf32, #tpu.memory_space<vmem>> -> memref<1x128xf32, #tpu.memory_space<vmem>>
    %68 = tpu.memref_slice %arg11[%9] : memref<2x!tpu.dma_semaphore, #tpu.memory_space<semaphore_mem>> -> memref<1x!tpu.dma_semaphore, #tpu.memory_space<semaphore_mem>>
    %69 = tpu.memref_squeeze %68 : memref<1x!tpu.dma_semaphore, #tpu.memory_space<semaphore_mem>> -> memref<!tpu.dma_semaphore, #tpu.memory_space<semaphore_mem>>
    tpu.wait_dma2 semaphore(%69 : memref<!tpu.dma_semaphore, #tpu.memory_space<semaphore_mem>>) src(%65 : memref<1x128xf32, #tpu.memory_space<any>>) dst(%67 : memref<1x128xf32, #tpu.memory_space<vmem>>)
    %70 = arith.index_cast %9 : i32 to index
    %c0_49 = arith.constant 0 : index
    %c0_50 = arith.constant 0 : index
    %71 = vector.load %arg10[%70, %c0_49, %c0_50] : memref<2x8x128xf32, #tpu.memory_space<vmem>>, vector<1x8x128xf32>
    %72 = vector.shape_cast %71 : vector<1x8x128xf32> to vector<8x128xf32>
    %73 = arith.addf %72, %29 : vector<8x128xf32>
    %cst = arith.constant dense<0.000000e+00> : vector<8xf32>
    %74 = vector.multi_reduction <add>, %73, %cst [1] : vector<8x128xf32> to vector<8xf32>
    %75 = vector.shape_cast %74 : vector<8xf32> to vector<8x1xf32>
    %cst_51 = arith.constant 1.280000e+02 : f32
    %76 = vector.broadcast %cst_51 : f32 to vector<8x1xf32>
    %77 = arith.divf %75, %76 : vector<8x1xf32>
    %78 = vector.broadcast %77 : vector<8x1xf32> to vector<8x128xf32>
    %79 = arith.subf %73, %78 : vector<8x128xf32>
    %80 = arith.mulf %79, %79 : vector<8x128xf32>
    %cst_52 = arith.constant dense<0.000000e+00> : vector<8xf32>
    %81 = vector.multi_reduction <add>, %80, %cst_52 [1] : vector<8x128xf32> to vector<8xf32>
    %82 = vector.shape_cast %81 : vector<8xf32> to vector<8x1xf32>
    %cst_53 = arith.constant 1.280000e+02 : f32
    %83 = vector.broadcast %cst_53 : f32 to vector<8x1xf32>
    %84 = arith.divf %82, %83 : vector<8x1xf32>
    %c0_54 = arith.constant 0 : index
    %c0_55 = arith.constant 0 : index
    %85 = vector.load %arg7[%c0_54, %c0_55] : memref<1x128xf32, #tpu.memory_space<vmem>>, vector<1x128xf32>
    %cst_56 = arith.constant 9.99999974E-6 : f32
    %86 = vector.broadcast %cst_56 : f32 to vector<8x1xf32>
    %87 = arith.addf %84, %86 : vector<8x1xf32>
    %88 = math.rsqrt %87 : vector<8x1xf32>
    %89 = vector.broadcast %85 : vector<1x128xf32> to vector<8x128xf32>
    %90 = vector.broadcast %88 : vector<8x1xf32> to vector<8x128xf32>
    %91 = arith.mulf %89, %90 : vector<8x128xf32>
    %92 = arith.mulf %79, %91 : vector<8x128xf32>
    %c0_57 = arith.constant 0 : index
    %c0_58 = arith.constant 0 : index
    %93 = vector.load %arg8[%c0_57, %c0_58] : memref<1x128xf32, #tpu.memory_space<vmem>>, vector<1x128xf32>
    %94 = vector.broadcast %93 : vector<1x128xf32> to vector<8x128xf32>
    %95 = arith.addf %92, %94 : vector<8x128xf32>
    %c0_59 = arith.constant 0 : index
    %c0_60 = arith.constant 0 : index
    %c0_61 = arith.constant 0 : index
    %96 = vector.load %arg9[%c0_59, %c0_60, %c0_61] : memref<1x8x128xf32, #tpu.memory_space<vmem>>, vector<1x8x128xf32>
    %97 = vector.shape_cast %96 : vector<1x8x128xf32> to vector<8x128xf32>
    %98 = vector.shape_cast %95 : vector<8x128xf32> to vector<1x8x128xf32>
    tpu.vector_store %arg9[%c0_59, %c0_60, %c0_61], %98 {strides = array<i32>} : memref<1x8x128xf32, #tpu.memory_space<vmem>>, vector<1x8x128xf32>,
    return
  }
  func.func @transform_0(%arg0: i32, %arg1: i32, %arg2: memref<16xi32, #tpu.memory_space<smem>>) -> (i32, i32, i32) {
    %c0_i32 = arith.constant 0 : i32
    %c0_i32_0 = arith.constant 0 : i32
    return %arg0, %arg1, %c0_i32 : i32, i32, i32
  }
  func.func @transform_2(%arg0: i32, %arg1: i32, %arg2: memref<16xi32, #tpu.memory_space<smem>>) -> (i32, i32) {
    %c0_i32 = arith.constant 0 : i32
    %c0_i32_0 = arith.constant 0 : i32
    return %arg1, %c0_i32 : i32, i32
  }
  func.func @transform_3(%arg0: i32, %arg1: i32, %arg2: memref<16xi32, #tpu.memory_space<smem>>) -> (i32, i32) {
    %c0_i32 = arith.constant 0 : i32
    %c0_i32_0 = arith.constant 0 : i32
    %c0_i32_1 = arith.constant 0 : i32
    return %c0_i32, %c0_i32_0 : i32, i32
  }
  func.func @transform_4(%arg0: i32, %arg1: i32, %arg2: memref<16xi32, #tpu.memory_space<smem>>) -> (i32, i32) {
    %c0_i32 = arith.constant 0 : i32
    %c0_i32_0 = arith.constant 0 : i32
    %c0_i32_1 = arith.constant 0 : i32
    return %c0_i32, %c0_i32_0 : i32, i32
  }
  func.func @transform_5(%arg0: i32, %arg1: i32, %arg2: memref<16xi32, #tpu.memory_space<smem>>) -> (i32, i32) {
    %c0_i32 = arith.constant 0 : i32
    %c0_i32_0 = arith.constant 0 : i32
    %c0_i32_1 = arith.constant 0 : i32
    return %c0_i32, %c0_i32_0 : i32, i32
  }
  func.func @transform_6(%arg0: i32, %arg1: i32, %arg2: memref<16xi32, #tpu.memory_space<smem>>) -> (i32, i32, i32) {
    %c0_i32 = arith.constant 0 : i32
    %c0_i32_0 = arith.constant 0 : i32
    return %arg0, %arg1, %c0_i32 : i32, i32, i32
  }
}

</mosaic_0001>

<llo_original>
// kernel: tpu_custom_call.1
$region0: #{tpu_custom_call.1}
  #allocation0 [shape = 'u32[]', space=smem, size = 0x4, offset = 0x4, fixed_abs, tag = 'smem constant byte address 0x4 - core index']
  #allocation1 [shape = 'u32[144,128]{1,0:T(1,128)}', space=vmem, size = 0x12000, scoped, tag = 'internal scratch']
  #allocation2 [shape = 'f32[2,8,128]{2,1,0:T(8,128)}', space=vmem, size = 0x2000, scoped, tag = 'scratch operand']
  #allocation3 [shape = 's32[2]{0}', space=sflag, size = 0x8, scoped, tag = 'scratch operand']
  #allocation4 [shape = 's32[1]{0}', space=sflag, size = 0x4, scoped, tag = 'scoped memory for tpu_custom_call.1']
  #allocation5 [shape = 'u8[512]{0}', space=smem, size = 0x200, scoped, tag = 'prefetched SMEM operand 0']
  #allocation8 [shape = 's32[]', space=sflag, size = 0x4, offset = 0, fixed_abs, tag = 'sflag constant byte address 0x0 - dummy sync flag']
  #allocation9 [shape = 's32[]', space=sflag, size = 0x4, offset = 0, fixed_abs, tag = 'sflag constant byte address 0x0 - dummy sync flag']
  #allocation10 [shape = 'u32[]', space=smem, size = 0x4, offset = 0x44, fixed_abs, tag = 'smem constant byte address 0x44 - assertion arg 0']
  #allocation11 [shape = 'u32[]', space=smem, size = 0x4, offset = 0x48, fixed_abs, tag = 'smem constant byte address 0x48 - assertion arg 1']
  #allocation12 [shape = 's32[]', space=sflag, size = 0x4, offset = 0, fixed_abs, tag = 'sflag constant byte address 0x0 - dummy sync flag']
  #allocation13 [shape = 's32[]', space=sflag, size = 0x4, offset = 0, fixed_abs, tag = 'sflag constant byte address 0x0 - dummy sync flag']
  #allocation14 [shape = 's32[]', space=sflag, size = 0x4, offset = 0, fixed_abs, tag = 'sflag constant byte address 0x0 - dummy sync flag']
  #allocation15 [shape = 's32[]', space=sflag, size = 0x4, offset = 0, fixed_abs, tag = 'sflag constant byte address 0x0 - dummy sync flag']
  #allocation16 [shape = 's32[]', space=sflag, size = 0x4, offset = 0, fixed_abs, tag = 'sflag constant byte address 0x0 - dummy sync flag']
  #allocation17 [shape = 's32[]', space=sflag, size = 0x4, offset = 0, fixed_abs, tag = 'sflag constant byte address 0x0 - dummy sync flag']
  #allocation18 [shape = 's32[]', space=sflag, size = 0x4, offset = 0, fixed_abs, tag = 'sflag constant byte address 0x0 - dummy sync flag']
  #allocation19 [shape = 's32[]', space=sflag, size = 0x4, offset = 0, fixed_abs, tag = 'sflag constant byte address 0x0 - dummy sync flag']
  #allocation20 [shape = 's32[]', space=sflag, size = 0x4, offset = 0, fixed_abs, tag = 'sflag constant byte address 0x0 - dummy sync flag']
  #allocation21 [shape = 's32[]', space=sflag, size = 0x4, offset = 0, fixed_abs, tag = 'sflag constant byte address 0x0 - dummy sync flag']
  #allocation22 [shape = 's32[]', space=sflag, size = 0x4, offset = 0, fixed_abs, tag = 'sflag constant byte address 0x0 - dummy sync flag']
  #allocation23 [shape = 's32[]', space=sflag, size = 0x4, offset = 0, fixed_abs, tag = 'sflag constant byte address 0x0 - dummy sync flag']
  #allocation24 [shape = 's32[]', space=sflag, size = 0x4, offset = 0, fixed_abs, tag = 'sflag constant byte address 0x0 - dummy sync flag']
  #allocation25 [shape = 's32[]', space=sflag, size = 0x4, offset = 0, fixed_abs, tag = 'sflag constant byte address 0x0 - dummy sync flag']
  #allocation26 [shape = 's32[]', space=sflag, size = 0x4, offset = 0, fixed_abs, tag = 'sflag constant byte address 0x0 - dummy sync flag']
  #allocation27 [shape = 's32[]', space=sflag, size = 0x4, offset = 0, fixed_abs, tag = 'sflag constant byte address 0x0 - dummy sync flag']
  #allocation28 [shape = 's32[]', space=sflag, size = 0x4, offset = 0, fixed_abs, tag = 'sflag constant byte address 0x0 - dummy sync flag']
  #allocation29 [shape = 's32[]', space=sflag, size = 0x4, offset = 0, fixed_abs, tag = 'sflag constant byte address 0x0 - dummy sync flag']
  #allocation30 [shape = 's32[]', space=sflag, size = 0x4, offset = 0, fixed_abs, tag = 'sflag constant byte address 0x0 - dummy sync flag']
  #allocation31 [shape = 's32[]', space=sflag, size = 0x4, offset = 0, fixed_abs, tag = 'sflag constant byte address 0x0 - dummy sync flag']
  #allocation32 [shape = 's32[]', space=sflag, size = 0x4, offset = 0, fixed_abs, tag = 'sflag constant byte address 0x0 - dummy sync flag']
  #allocation33 [shape = 's32[]', space=sflag, size = 0x4, offset = 0, fixed_abs, tag = 'sflag constant byte address 0x0 - dummy sync flag']
  #allocation34 [shape = 's32[]', space=sflag, size = 0x4, offset = 0, fixed_abs, tag = 'sflag constant byte address 0x0 - dummy sync flag']
  #allocation35 [shape = 's32[]', space=sflag, size = 0x4, offset = 0, fixed_abs, tag = 'sflag constant byte address 0x0 - dummy sync flag']
  #allocation36 [shape = 's32[]', space=sflag, size = 0x4, offset = 0, fixed_abs, tag = 'sflag constant byte address 0x0 - dummy sync flag']
  #allocation37 [shape = 's32[]', space=sflag, size = 0x4, offset = 0, fixed_abs, tag = 'sflag constant byte address 0x0 - dummy sync flag']
  #allocation38 [shape = 's32[]', space=sflag, size = 0x4, offset = 0, fixed_abs, tag = 'sflag constant byte address 0x0 - dummy sync flag']
  #allocation39 [shape = 's32[]', space=sflag, size = 0x4, offset = 0, fixed_abs, tag = 'sflag constant byte address 0x0 - dummy sync flag']
  #allocation40 [shape = 's32[]', space=sflag, size = 0x4, offset = 0, fixed_abs, tag = 'sflag constant byte address 0x0 - dummy sync flag']
  #allocation41 [shape = 's32[]', space=sflag, size = 0x4, offset = 0, fixed_abs, tag = 'sflag constant byte address 0x0 - dummy sync flag']
  %s0 = inlined_call_operand.vmem [shape: s32[16], index: 0, kind: input, shape index: {}]
  %s1 = inlined_call_operand.vmem [shape: f32[2,8,1], index: 1, kind: input, shape index: {}]
  %s2 = inlined_call_operand.hbm [shape: f32[64,128], index: 2, kind: input, shape index: {}]
  %s3 = inlined_call_operand.vmem [shape: f32[8,128], index: 3, kind: input, shape index: {}]
  %s4 = inlined_call_operand.vmem [shape: f32[2,128], index: 4, kind: input, shape index: {}]
  %s5 = inlined_call_operand.vmem [shape: f32[1,128], index: 5, kind: input, shape index: {}]
  %s6 = inlined_call_operand.vmem [shape: f32[1,128], index: 6, kind: input, shape index: {}]
  %s7 = inlined_call_operand.hbm [shape: f32[2,8,128], index: 7, kind: output, shape index: {}]
  %s8 = sld [smem:[#allocation0]]
  $region125: #{tpu_custom_call.1} parent=0
    _
  %s10 = ssub.s32 1, %s8
  %s11 = scalar_select 0, %s10, %s8
  %s12 = sshll.u32 %s0, 4
  %s13 = int_to_ptr.vmem [resolvable:$true] %s12
  %15 = dma.vmem_to_smem %s13, 16, [#allocation5], [#allocation4]
  %16 = dma.done [#allocation4], 16
  %17 = sfence
  $region1: #{tpu_custom_call.1} parent=0
    #allocation6 [shape = 'u8[8192]{0}', space=vmem, size = 0x2000, scoped, tag = 'output window, operand 0']
    #allocation7 [shape = 's32[2]{0}', space=sflag, size = 0x8, scoped, tag = 'scoped memory for tpu_custom_call.1']
    %18 = vsyncpa [#allocation7], 0
    %s19 = scalar_lea.sflag [#allocation7], 1
    %20 = vsyncpa %s19, 0
    loop: start=0, step=1, limit=4
    $region2: #{tpu_custom_call.1} parent=1 // loop_pre_header
      _
    $region3: #{tpu_custom_call.1} parent=1 // loop_header
      %s22 = sphi 0, %s26
      %p23 = scmp.ge.s32.totalorder %s22, 4
      %s29 = sphi 0, %s41
      %s30 = sphi 0, %s37
      %s31 = sphi 0, %s29
      %s32 = sphi 0, %s30
      %s33 = sphi 0, %s31
      %s34 = sphi 0, %s32
      %s46 = sphi 0, %s48
      %s49 = sphi 0, %s46
      %s50 = sphi 0, %s49
      %s66 = sphi 0, %s50
      %s72 = sphi 0, %s74
      %s75 = sphi 0, %s72
      %s76 = sphi 0, %s75
      %s92 = sphi 0, %s76
      %s96 = sphi 0, %s96
      %s98 = sphi 0, %s96
      %s99 = sphi 0, %s98
      %s113 = sphi 0, %s99
      %s117 = sphi 0, %s117
      %s119 = sphi 0, %s117
      %s120 = sphi 0, %s119
      %s134 = sphi 0, %s120
      %s138 = sphi 0, %s138
      %s140 = sphi 0, %s138
      %s141 = sphi 0, %s140
      %s155 = sphi 0, %s141
      %s163 = sphi 0, %s165
      %s166 = sphi 0, %s163
      %s167 = sphi 0, %s166
      %s183 = sphi 0, %s167
    $region4: #{tpu_custom_call.1} parent=1 // loop_header_branch
      %25 = sbr.rel (%p23) target = $region8
    $region5: #{tpu_custom_call.1} parent=1 // loop_body
      %s27 = ssub.s32 %s22, 1
      %s28 = ssub.s32 %s22, 2
      %s35 = sadd.s32 1, %s30
      %p36 = scmp.ge.s32.totalorder %s35, 1
      %s37 = scalar_select %p36, 0, %s35
      %s38 = sadd.s32 1, %s29
      %s39 = scalar_select %p36, %s38, %s29
      %p40 = scmp.ge.s32.totalorder %s39, 2
      %s41 = scalar_select %p40, 0, %s39
      %s42 = ssub.s32 %s29, %s41
      %s43 = ssub.s32 %s30, %s37
      %s44 = sor.u32 %s42, %s43
      %p45 = scmp.eq.s32.totalorder %s44, 0
      %s47 = sadd.s32 %s46, 1
      %s48 = scalar_select %p45, %s46, %s47
      %p51 = pneg %p45
      %p52 = scmp.eq.s32.totalorder %s22, 1
      %p53 = por %p51, %p52
      %p54 = scmp.ne.s32.totalorder %s46, %s49
      %p55 = scmp.eq.s32.totalorder %s22, 0
      %p56 = por %p54, %p55
      %p57 = scmp.ne.s32.totalorder %s46, %s49
      %p58 = scmp.eq.s32.totalorder %s27, 1
      %p59 = por %p57, %p58
      %p60 = scmp.ne.s32.totalorder %s49, %s50
      %p61 = scmp.eq.s32.totalorder %s27, 0
      %p62 = por %p60, %p61
      %p63 = scmp.ne.s32.totalorder %s49, %s50
      %p64 = scmp.eq.s32.totalorder %s28, 1
      %p65 = por %p63, %p64
      %p67 = scmp.ne.s32.totalorder %s50, %s66
      %p68 = scmp.eq.s32.totalorder %s28, 0
      %p69 = por %p67, %p68
      %s70 = ssub.s32 %s30, %s37
      %p71 = scmp.eq.s32.totalorder %s70, 0
      %s73 = sadd.s32 %s72, 1
      %s74 = scalar_select %p71, %s72, %s73
      %p77 = pneg %p71
      %p78 = scmp.eq.s32.totalorder %s22, 1
      %p79 = por %p77, %p78
      %p80 = scmp.ne.s32.totalorder %s72, %s75
      %p81 = scmp.eq.s32.totalorder %s22, 0
      %p82 = por %p80, %p81
      %p83 = scmp.ne.s32.totalorder %s72, %s75
      %p84 = scmp.eq.s32.totalorder %s27, 1
      %p85 = por %p83, %p84
      %p86 = scmp.ne.s32.totalorder %s75, %s76
      %p87 = scmp.eq.s32.totalorder %s27, 0
      %p88 = por %p86, %p87
      %p89 = scmp.ne.s32.totalorder %s75, %s76
      %p90 = scmp.eq.s32.totalorder %s28, 1
      %p91 = por %p89, %p90
      %p93 = scmp.ne.s32.totalorder %s76, %s92
      %p94 = scmp.eq.s32.totalorder %s28, 0
      %p95 = por %p93, %p94
      %s97 = sadd.s32 %s96, 1
      %p100 = scmp.eq.s32.totalorder %s22, 1
      %p101 = scmp.ne.s32.totalorder %s96, %s98
      %p102 = scmp.eq.s32.totalorder %s22, 0
      %p103 = por %p101, %p102
      %p104 = scmp.ne.s32.totalorder %s96, %s98
      %p105 = scmp.eq.s32.totalorder %s27, 1
      %p106 = por %p104, %p105
      %p107 = scmp.ne.s32.totalorder %s98, %s99
      %p108 = scmp.eq.s32.totalorder %s27, 0
      %p109 = por %p107, %p108
      %p110 = scmp.ne.s32.totalorder %s98, %s99
      %p111 = scmp.eq.s32.totalorder %s28, 1
      %p112 = por %p110, %p111
      %p114 = scmp.ne.s32.totalorder %s99, %s113
      %p115 = scmp.eq.s32.totalorder %s28, 0
      %p116 = por %p114, %p115
      %s118 = sadd.s32 %s117, 1
      %p121 = scmp.eq.s32.totalorder %s22, 1
      %p122 = scmp.ne.s32.totalorder %s117, %s119
      %p123 = scmp.eq.s32.totalorder %s22, 0
      %p124 = por %p122, %p123
      %p125 = scmp.ne.s32.totalorder %s117, %s119
      %p126 = scmp.eq.s32.totalorder %s27, 1
      %p127 = por %p125, %p126
      %p128 = scmp.ne.s32.totalorder %s119, %s120
      %p129 = scmp.eq.s32.totalorder %s27, 0
      %p130 = por %p128, %p129
      %p131 = scmp.ne.s32.totalorder %s119, %s120
      %p132 = scmp.eq.s32.totalorder %s28, 1
      %p133 = por %p131, %p132
      %p135 = scmp.ne.s32.totalorder %s120, %s134
      %p136 = scmp.eq.s32.totalorder %s28, 0
      %p137 = por %p135, %p136
      %s139 = sadd.s32 %s138, 1
      %p142 = scmp.eq.s32.totalorder %s22, 1
      %p143 = scmp.ne.s32.totalorder %s138, %s140
      %p144 = scmp.eq.s32.totalorder %s22, 0
      %p145 = por %p143, %p144
      %p146 = scmp.ne.s32.totalorder %s138, %s140
      %p147 = scmp.eq.s32.totalorder %s27, 1
      %p148 = por %p146, %p147
      %p149 = scmp.ne.s32.totalorder %s140, %s141
      %p150 = scmp.eq.s32.totalorder %s27, 0
      %p151 = por %p149, %p150
      %p152 = scmp.ne.s32.totalorder %s140, %s141
      %p153 = scmp.eq.s32.totalorder %s28, 1
      %p154 = por %p152, %p153
      %p156 = scmp.ne.s32.totalorder %s141, %s155
      %p157 = scmp.eq.s32.totalorder %s28, 0
      %p158 = por %p156, %p157
      %s159 = ssub.s32 %s29, %s41
      %s160 = ssub.s32 %s30, %s37
      %s161 = sor.u32 %s159, %s160
      %p162 = scmp.eq.s32.totalorder %s161, 0
      %s164 = sadd.s32 %s163, 1
      %s165 = scalar_select %p162, %s163, %s164
      %p168 = pneg %p162
      %p169 = scmp.eq.s32.totalorder %s22, 1
      %p170 = por %p168, %p169
      %p171 = scmp.ne.s32.totalorder %s163, %s166
      %p172 = scmp.eq.s32.totalorder %s22, 0
      %p173 = por %p171, %p172
      %p174 = scmp.ne.s32.totalorder %s163, %s166
      %p175 = scmp.eq.s32.totalorder %s27, 1
      %p176 = por %p174, %p175
      %p177 = scmp.ne.s32.totalorder %s166, %s167
      %p178 = scmp.eq.s32.totalorder %s27, 0
      %p179 = por %p177, %p178
      %p180 = scmp.ne.s32.totalorder %s166, %s167
      %p181 = scmp.eq.s32.totalorder %s28, 1
      %p182 = por %p180, %p181
      %p184 = scmp.ne.s32.totalorder %s167, %s183
      %p185 = scmp.eq.s32.totalorder %s28, 0
      %p186 = por %p184, %p185
      %p187 = scmp.le.s32.totalorder 1, %s22
      %p188 = scmp.lt.s32.totalorder %s22, 3
      %p189 = pnand %p187, %p188
      %p190 = pneg %p189
      // Predicated region
      $region9: #{tpu_custom_call.1} parent=5 // pred_check
        _
      $region10: #{tpu_custom_call.1} parent=5 // pred_check_branch
        %192 = sbr.rel (%p189) target = $region12
      $region11: #{tpu_custom_call.1} parent=5 // pred_region
        %s193 = ssub.s32 %s22, 1
        // Predicated region
        $region13: #{tpu_custom_call.1} parent=11 // pred_check
          %p194 = pneg %p88
        $region14: #{tpu_custom_call.1} parent=11 // pred_check_branch
          %196 = sbr.rel (%p194) target = $region16
        $region15: #{tpu_custom_call.1} parent=11 // pred_region
          %p197 = scmp.lt.s32.totalorder %s32, 0
          %s198 = scalar_select %p197, %s32, 0
          %s199 = smul.addr %s198, 8
          %s200 = scalar_lea.vmem %s3, %s199
        $region16: #{tpu_custom_call.1} parent=11 // pred_fallthru
          _
        // Predicated region
        $region17: #{tpu_custom_call.1} parent=11 // pred_check
          %p201 = pneg %p109
        $region18: #{tpu_custom_call.1} parent=11 // pred_check_branch
          %203 = sbr.rel (%p201) target = $region20
        $region19: #{tpu_custom_call.1} parent=11 // pred_region
          _
        $region20: #{tpu_custom_call.1} parent=11 // pred_fallthru
          _
        // Predicated region
        $region21: #{tpu_custom_call.1} parent=11 // pred_check
          %p204 = pneg %p130
        $region22: #{tpu_custom_call.1} parent=11 // pred_check_branch
          %206 = sbr.rel (%p204) target = $region24
        $region23: #{tpu_custom_call.1} parent=11 // pred_region
          _
        $region24: #{tpu_custom_call.1} parent=11 // pred_fallthru
          _
        // Predicated region
        $region25: #{tpu_custom_call.1} parent=11 // pred_check
          %p207 = pneg %p151
        $region26: #{tpu_custom_call.1} parent=11 // pred_check_branch
          %209 = sbr.rel (%p207) target = $region28
        $region27: #{tpu_custom_call.1} parent=11 // pred_region
          _
        $region28: #{tpu_custom_call.1} parent=11 // pred_fallthru
          _
      $region12: #{tpu_custom_call.1} parent=5 // pred_fallthru
        _
      %p210 = scmp.lt.s32.totalorder %s22, 2
      // Predicated region
      $region29: #{tpu_custom_call.1} parent=5 // pred_check
        %p211 = pneg %p210
      $region30: #{tpu_custom_call.1} parent=5 // pred_check_branch
        %213 = sbr.rel (%p211) target = $region32
      $region31: #{tpu_custom_call.1} parent=5 // pred_region
        // Predicated region
        $region33: #{tpu_custom_call.1} parent=31 // pred_check
          %p214 = pneg %p56
        $region34: #{tpu_custom_call.1} parent=31 // pred_check_branch
          %216 = sbr.rel (%p214) target = $region36
        $region35: #{tpu_custom_call.1} parent=31 // pred_region
          %p217 = scmp.lt.s32.totalorder %s29, 1
          %s218 = scalar_select %p217, %s29, 1
          %p219 = scmp.lt.s32.totalorder %s30, 0
          %s220 = scalar_select %p219, %s30, 0
          %s221 = sadd.s32 %s220, %s218
          %s222 = smul.addr %s221, 8
          %s223 = scalar_lea.vmem %s1, %s222
        $region36: #{tpu_custom_call.1} parent=31 // pred_fallthru
          _
      $region32: #{tpu_custom_call.1} parent=5 // pred_fallthru
        _
      %p224 = scmp.le.s32.totalorder 1, %s22
      %p225 = scmp.lt.s32.totalorder %s22, 3
      %p226 = pnand %p224, %p225
      %p227 = pneg %p226
      // Predicated region
      $region37: #{tpu_custom_call.1} parent=5 // pred_check
        _
      $region38: #{tpu_custom_call.1} parent=5 // pred_check_branch
        %229 = sbr.rel (%p226) target = $region40
      $region39: #{tpu_custom_call.1} parent=5 // pred_region
        %s230 = ssub.s32 %s22, 1
        %p231 = scmp.lt.s32.totalorder %s31, 1
        %s232 = scalar_select %p231, %s31, 1
        %p233 = scmp.lt.s32.totalorder %s32, 0
        %s234 = scalar_select %p233, %s32, 0
        %s235 = sadd.s32 %s234, %s232
        %s236 = smul.addr %s235, 8
        %s237 = scalar_lea.vmem %s1, %s236
        %p238 = pneg %p62
        %p239 = pneg %p59
        %p240 = scmp.lt.s32.totalorder %s32, 0
        %s241 = scalar_select %p240, %s32, 0
        %s242 = smul.addr %s241, 8
        %s243 = scalar_lea.vmem %s3, %s242
        %p244 = pneg %p88
        %p245 = pneg %p85
        %p246 = pneg %p109
        %p247 = pneg %p106
        %p248 = pneg %p130
        %p249 = pneg %p127
        %p250 = pneg %p151
        %p251 = pneg %p148
        %p252 = pneg %p179
        %p253 = pneg %p176
        %s254 = sand.u32 %s166, 1
        %s255 = scalar_lea.sflag [#allocation7], %s254
        %s256 = sand.u32 %s166, 1
        %s257 = smul.addr %s256, 8
        %s258 = scalar_lea.vmem [#allocation6], %s257
        %p259 = scmp.lt.s32.totalorder %s31, 1
        %s260 = scalar_select %p259, %s31, 1
        %p261 = scmp.lt.s32.totalorder %s32, 0
        %s262 = scalar_select %p261, %s32, 0
        %s263 = sadd.s32 %s262, %s260
        %s264 = smul.addr %s263, 8
        %s265 = scalar_lea.vmem %s1, %s264
        %p266 = scmp.lt.s32.totalorder %s32, 0
        %s267 = scalar_select %p266, %s32, 0
        %s268 = smul.addr %s267, 8
        %s269 = scalar_lea.vmem %s3, %s268
        %p270 = scmp.lt.s32.totalorder %s32, 0
        %s271 = ssub.s32 0, %s32
        %s272 = scalar_select %p270, %s271, %s32
        %s273 = sand.u32 %s272, 1
        %s274 = ssub.s32 0, %s273
        %s275 = scalar_select %p270, %s274, %s273
        %p276 = scmp.ne.s32.totalorder %s275, 0
        %p277 = scmp.lt.s32.totalorder %s275, 0
        %p278 = pnand %p277, %p276
        %p279 = pneg %p278
        %s280 = sadd.s32 %s275, 2
        %s281 = scalar_select %p279, %s280, %s275
        %s282 = ssub.s32 1, %s281
        %p283 = scmp.eq.s32.totalorder %s32, 0
        // Predicated region
        $region41: #{tpu_custom_call.1} parent=39 // pred_check
          %p284 = pneg %p283
        $region42: #{tpu_custom_call.1} parent=39 // pred_check_branch
          %286 = sbr.rel (%p284) target = $region44
        $region43: #{tpu_custom_call.1} parent=39 // pred_region
          %s287 = smul.u32 %s31, 8
          %s288 = sld [smem:[#allocation5 + %s287]]
          %s289 = smul.addr %s288, 16
          %s290 = scalar_lea.hbm %s2, %s289
          %s291 = smul.u32 %s281, 8
          %s292 = scalar_lea.vmem [#allocation2], %s291
          %s293 = scalar_lea.sflag [#allocation3], %s281
          // Predicated region
          $region45: #{tpu_custom_call.1} parent=43 // pred_check
            _
          $region46: #{tpu_custom_call.1} parent=43 // pred_check_branch
            %295 = sbr.rel target = $region48
          $region47: #{tpu_custom_call.1} parent=43 // pred_region
            %296 = sst [smem:[#allocation10]] [#allocation9]
            %297 = sst [smem:[#allocation11]] [#allocation8]
          $region48: #{tpu_custom_call.1} parent=43 // pred_fallthru
            _
          %299 = shalt.err (0)
          %s301 = sshll.u32 %s292, 4
          %s302 = int_to_ptr.vmem [resolvable:$true] %s301
          %304 = dma.hbm_to_vmem [thread:$0]  %s290, 16, %s302, %s293
          %s305 = sadd.s32 %s287, 1
          %s306 = sld [smem:[#allocation5 + %s305]]
          %s307 = smul.addr %s306, 16
          %s308 = scalar_lea.hbm %s2, %s307
          %s309 = sadd.s32 1, %s291
          %s310 = scalar_lea.vmem [#allocation2], %s309
          // Predicated region
          $region49: #{tpu_custom_call.1} parent=43 // pred_check
            _
          $region50: #{tpu_custom_call.1} parent=43 // pred_check_branch
            %312 = sbr.rel target = $region52
          $region51: #{tpu_custom_call.1} parent=43 // pred_region
            %313 = sst [smem:[#allocation10]] [#allocation13]
            %314 = sst [smem:[#allocation11]] [#allocation12]
          $region52: #{tpu_custom_call.1} parent=43 // pred_fallthru
            _
          %316 = shalt.err (0)
          %s318 = sshll.u32 %s310, 4
          %s319 = int_to_ptr.vmem [resolvable:$true] %s318
          %321 = dma.hbm_to_vmem [thread:$0]  %s308, 16, %s319, %s293
          %s322 = sadd.s32 %s287, 2
          %s323 = sld [smem:[#allocation5 + %s322]]
          %s324 = smul.addr %s323, 16
          %s325 = scalar_lea.hbm %s2, %s324
          %s326 = sadd.s32 2, %s291
          %s327 = scalar_lea.vmem [#allocation2], %s326
          // Predicated region
          $region53: #{tpu_custom_call.1} parent=43 // pred_check
            _
          $region54: #{tpu_custom_call.1} parent=43 // pred_check_branch
            %329 = sbr.rel target = $region56
          $region55: #{tpu_custom_call.1} parent=43 // pred_region
            %330 = sst [smem:[#allocation10]] [#allocation15]
            %331 = sst [smem:[#allocation11]] [#allocation14]
          $region56: #{tpu_custom_call.1} parent=43 // pred_fallthru
            _
          %333 = shalt.err (0)
          %s335 = sshll.u32 %s327, 4
          %s336 = int_to_ptr.vmem [resolvable:$true] %s335
          %338 = dma.hbm_to_vmem [thread:$0]  %s325, 16, %s336, %s293
          %s339 = sadd.s32 %s287, 3
          %s340 = sld [smem:[#allocation5 + %s339]]
          %s341 = smul.addr %s340, 16
          %s342 = scalar_lea.hbm %s2, %s341
          %s343 = sadd.s32 3, %s291
          %s344 = scalar_lea.vmem [#allocation2], %s343
          // Predicated region
          $region57: #{tpu_custom_call.1} parent=43 // pred_check
            _
          $region58: #{tpu_custom_call.1} parent=43 // pred_check_branch
            %346 = sbr.rel target = $region60
          $region59: #{tpu_custom_call.1} parent=43 // pred_region
            %347 = sst [smem:[#allocation10]] [#allocation17]
            %348 = sst [smem:[#allocation11]] [#allocation16]
          $region60: #{tpu_custom_call.1} parent=43 // pred_fallthru
            _
          %350 = shalt.err (0)
          %s352 = sshll.u32 %s344, 4
          %s353 = int_to_ptr.vmem [resolvable:$true] %s352
          %355 = dma.hbm_to_vmem [thread:$0]  %s342, 16, %s353, %s293
          %s356 = sadd.s32 %s287, 4
          %s357 = sld [smem:[#allocation5 + %s356]]
          %s358 = smul.addr %s357, 16
          %s359 = scalar_lea.hbm %s2, %s358
          %s360 = sadd.s32 4, %s291
          %s361 = scalar_lea.vmem [#allocation2], %s360
          // Predicated region
          $region61: #{tpu_custom_call.1} parent=43 // pred_check
            _
          $region62: #{tpu_custom_call.1} parent=43 // pred_check_branch
            %363 = sbr.rel target = $region64
          $region63: #{tpu_custom_call.1} parent=43 // pred_region
            %364 = sst [smem:[#allocation10]] [#allocation19]
            %365 = sst [smem:[#allocation11]] [#allocation18]
          $region64: #{tpu_custom_call.1} parent=43 // pred_fallthru
            _
          %367 = shalt.err (0)
          %s369 = sshll.u32 %s361, 4
          %s370 = int_to_ptr.vmem [resolvable:$true] %s369
          %372 = dma.hbm_to_vmem [thread:$0]  %s359, 16, %s370, %s293
          %s373 = sadd.s32 %s287, 5
          %s374 = sld [smem:[#allocation5 + %s373]]
          %s375 = smul.addr %s374, 16
          %s376 = scalar_lea.hbm %s2, %s375
          %s377 = sadd.s32 5, %s291
          %s378 = scalar_lea.vmem [#allocation2], %s377
          // Predicated region
          $region65: #{tpu_custom_call.1} parent=43 // pred_check
            _
          $region66: #{tpu_custom_call.1} parent=43 // pred_check_branch
            %380 = sbr.rel target = $region68
          $region67: #{tpu_custom_call.1} parent=43 // pred_region
            %381 = sst [smem:[#allocation10]] [#allocation21]
            %382 = sst [smem:[#allocation11]] [#allocation20]
          $region68: #{tpu_custom_call.1} parent=43 // pred_fallthru
            _
          %384 = shalt.err (0)
          %s386 = sshll.u32 %s378, 4
          %s387 = int_to_ptr.vmem [resolvable:$true] %s386
          %389 = dma.hbm_to_vmem [thread:$0]  %s376, 16, %s387, %s293
          %s390 = sadd.s32 %s287, 6
          %s391 = sld [smem:[#allocation5 + %s390]]
          %s392 = smul.addr %s391, 16
          %s393 = scalar_lea.hbm %s2, %s392
          %s394 = sadd.s32 6, %s291
          %s395 = scalar_lea.vmem [#allocation2], %s394
          // Predicated region
          $region69: #{tpu_custom_call.1} parent=43 // pred_check
            _
          $region70: #{tpu_custom_call.1} parent=43 // pred_check_branch
            %397 = sbr.rel target = $region72
          $region71: #{tpu_custom_call.1} parent=43 // pred_region
            %398 = sst [smem:[#allocation10]] [#allocation23]
            %399 = sst [smem:[#allocation11]] [#allocation22]
          $region72: #{tpu_custom_call.1} parent=43 // pred_fallthru
            _
          %401 = shalt.err (0)
          %s403 = sshll.u32 %s395, 4
          %s404 = int_to_ptr.vmem [resolvable:$true] %s403
          %406 = dma.hbm_to_vmem [thread:$0]  %s393, 16, %s404, %s293
          %s407 = sadd.s32 %s287, 7
          %s408 = sld [smem:[#allocation5 + %s407]]
          %s409 = smul.addr %s408, 16
          %s410 = scalar_lea.hbm %s2, %s409
          %s411 = sadd.s32 7, %s291
          %s412 = scalar_lea.vmem [#allocation2], %s411
          // Predicated region
          $region73: #{tpu_custom_call.1} parent=43 // pred_check
            _
          $region74: #{tpu_custom_call.1} parent=43 // pred_check_branch
            %414 = sbr.rel target = $region76
          $region75: #{tpu_custom_call.1} parent=43 // pred_region
            %415 = sst [smem:[#allocation10]] [#allocation25]
            %416 = sst [smem:[#allocation11]] [#allocation24]
          $region76: #{tpu_custom_call.1} parent=43 // pred_fallthru
            _
          %418 = shalt.err (0)
          %s420 = sshll.u32 %s412, 4
          %s421 = int_to_ptr.vmem [resolvable:$true] %s420
          %423 = dma.hbm_to_vmem [thread:$0]  %s410, 16, %s421, %s293
        $region44: #{tpu_custom_call.1} parent=39 // pred_fallthru
          _
        %s424 = sadd.s32 %s32, 1
        %p425 = scmp.lt.s32.totalorder %s424, 1
        // Predicated region
        $region77: #{tpu_custom_call.1} parent=39 // pred_check
          %p426 = pneg %p425
        $region78: #{tpu_custom_call.1} parent=39 // pred_check_branch
          %428 = sbr.rel (%p426) target = $region80
        $region79: #{tpu_custom_call.1} parent=39 // pred_region
          %s429 = smul.u32 %s31, 8
          %s430 = smul.u32 %s424, 8
          %s431 = sadd.s32 %s429, %s430
          %s432 = sld [smem:[#allocation5 + %s431]]
          %s433 = smul.addr %s432, 16
          %s434 = scalar_lea.hbm %s2, %s433
          %s435 = smul.u32 %s282, 8
          %s436 = scalar_lea.vmem [#allocation2], %s435
          %s437 = scalar_lea.sflag [#allocation3], %s282
          // Predicated region
          $region81: #{tpu_custom_call.1} parent=79 // pred_check
            _
          $region82: #{tpu_custom_call.1} parent=79 // pred_check_branch
            %439 = sbr.rel target = $region84
          $region83: #{tpu_custom_call.1} parent=79 // pred_region
            %440 = sst [smem:[#allocation10]] [#allocation27]
            %441 = sst [smem:[#allocation11]] [#allocation26]
          $region84: #{tpu_custom_call.1} parent=79 // pred_fallthru
            _
          %443 = shalt.err (0)
          %s445 = sshll.u32 %s436, 4
          %s446 = int_to_ptr.vmem [resolvable:$true] %s445
          %448 = dma.hbm_to_vmem [thread:$0]  %s434, 16, %s446, %s437
          %s449 = sadd.s32 %s431, 1
          %s450 = sld [smem:[#allocation5 + %s449]]
          %s451 = smul.addr %s450, 16
          %s452 = scalar_lea.hbm %s2, %s451
          %s453 = sadd.s32 1, %s435
          %s454 = scalar_lea.vmem [#allocation2], %s453
          // Predicated region
          $region85: #{tpu_custom_call.1} parent=79 // pred_check
            _
          $region86: #{tpu_custom_call.1} parent=79 // pred_check_branch
            %456 = sbr.rel target = $region88
          $region87: #{tpu_custom_call.1} parent=79 // pred_region
            %457 = sst [smem:[#allocation10]] [#allocation29]
            %458 = sst [smem:[#allocation11]] [#allocation28]
          $region88: #{tpu_custom_call.1} parent=79 // pred_fallthru
            _
          %460 = shalt.err (0)
          %s462 = sshll.u32 %s454, 4
          %s463 = int_to_ptr.vmem [resolvable:$true] %s462
          %465 = dma.hbm_to_vmem [thread:$0]  %s452, 16, %s463, %s437
          %s466 = sadd.s32 %s431, 2
          %s467 = sld [smem:[#allocation5 + %s466]]
          %s468 = smul.addr %s467, 16
          %s469 = scalar_lea.hbm %s2, %s468
          %s470 = sadd.s32 2, %s435
          %s471 = scalar_lea.vmem [#allocation2], %s470
          // Predicated region
          $region89: #{tpu_custom_call.1} parent=79 // pred_check
            _
          $region90: #{tpu_custom_call.1} parent=79 // pred_check_branch
            %473 = sbr.rel target = $region92
          $region91: #{tpu_custom_call.1} parent=79 // pred_region
            %474 = sst [smem:[#allocation10]] [#allocation31]
            %475 = sst [smem:[#allocation11]] [#allocation30]
          $region92: #{tpu_custom_call.1} parent=79 // pred_fallthru
            _
          %477 = shalt.err (0)
          %s479 = sshll.u32 %s471, 4
          %s480 = int_to_ptr.vmem [resolvable:$true] %s479
          %482 = dma.hbm_to_vmem [thread:$0]  %s469, 16, %s480, %s437
          %s483 = sadd.s32 %s431, 3
          %s484 = sld [smem:[#allocation5 + %s483]]
          %s485 = smul.addr %s484, 16
          %s486 = scalar_lea.hbm %s2, %s485
          %s487 = sadd.s32 3, %s435
          %s488 = scalar_lea.vmem [#allocation2], %s487
          // Predicated region
          $region93: #{tpu_custom_call.1} parent=79 // pred_check
            _
          $region94: #{tpu_custom_call.1} parent=79 // pred_check_branch
            %490 = sbr.rel target = $region96
          $region95: #{tpu_custom_call.1} parent=79 // pred_region
            %491 = sst [smem:[#allocation10]] [#allocation33]
            %492 = sst [smem:[#allocation11]] [#allocation32]
          $region96: #{tpu_custom_call.1} parent=79 // pred_fallthru
            _
          %494 = shalt.err (0)
          %s496 = sshll.u32 %s488, 4
          %s497 = int_to_ptr.vmem [resolvable:$true] %s496
          %499 = dma.hbm_to_vmem [thread:$0]  %s486, 16, %s497, %s437
          %s500 = sadd.s32 %s431, 4
          %s501 = sld [smem:[#allocation5 + %s500]]
          %s502 = smul.addr %s501, 16
          %s503 = scalar_lea.hbm %s2, %s502
          %s504 = sadd.s32 4, %s435
          %s505 = scalar_lea.vmem [#allocation2], %s504
          // Predicated region
          $region97: #{tpu_custom_call.1} parent=79 // pred_check
            _
          $region98: #{tpu_custom_call.1} parent=79 // pred_check_branch
            %507 = sbr.rel target = $region100
          $region99: #{tpu_custom_call.1} parent=79 // pred_region
            %508 = sst [smem:[#allocation10]] [#allocation35]
            %509 = sst [smem:[#allocation11]] [#allocation34]
          $region100: #{tpu_custom_call.1} parent=79 // pred_fallthru
            _
          %511 = shalt.err (0)
          %s513 = sshll.u32 %s505, 4
          %s514 = int_to_ptr.vmem [resolvable:$true] %s513
          %516 = dma.hbm_to_vmem [thread:$0]  %s503, 16, %s514, %s437
          %s517 = sadd.s32 %s431, 5
          %s518 = sld [smem:[#allocation5 + %s517]]
          %s519 = smul.addr %s518, 16
          %s520 = scalar_lea.hbm %s2, %s519
          %s521 = sadd.s32 5, %s435
          %s522 = scalar_lea.vmem [#allocation2], %s521
          // Predicated region
          $region101: #{tpu_custom_call.1} parent=79 // pred_check
            _
          $region102: #{tpu_custom_call.1} parent=79 // pred_check_branch
            %524 = sbr.rel target = $region104
          $region103: #{tpu_custom_call.1} parent=79 // pred_region
            %525 = sst [smem:[#allocation10]] [#allocation37]
            %526 = sst [smem:[#allocation11]] [#allocation36]
          $region104: #{tpu_custom_call.1} parent=79 // pred_fallthru
            _
          %528 = shalt.err (0)
          %s530 = sshll.u32 %s522, 4
          %s531 = int_to_ptr.vmem [resolvable:$true] %s530
          %533 = dma.hbm_to_vmem [thread:$0]  %s520, 16, %s531, %s437
          %s534 = sadd.s32 %s431, 6
          %s535 = sld [smem:[#allocation5 + %s534]]
          %s536 = smul.addr %s535, 16
          %s537 = scalar_lea.hbm %s2, %s536
          %s538 = sadd.s32 6, %s435
          %s539 = scalar_lea.vmem [#allocation2], %s538
          // Predicated region
          $region105: #{tpu_custom_call.1} parent=79 // pred_check
            _
          $region106: #{tpu_custom_call.1} parent=79 // pred_check_branch
            %541 = sbr.rel target = $region108
          $region107: #{tpu_custom_call.1} parent=79 // pred_region
            %542 = sst [smem:[#allocation10]] [#allocation39]
            %543 = sst [smem:[#allocation11]] [#allocation38]
          $region108: #{tpu_custom_call.1} parent=79 // pred_fallthru
            _
          %545 = shalt.err (0)
          %s547 = sshll.u32 %s539, 4
          %s548 = int_to_ptr.vmem [resolvable:$true] %s547
          %550 = dma.hbm_to_vmem [thread:$0]  %s537, 16, %s548, %s437
          %s551 = sadd.s32 %s431, 7
          %s552 = sld [smem:[#allocation5 + %s551]]
          %s553 = smul.addr %s552, 16
          %s554 = scalar_lea.hbm %s2, %s553
          %s555 = sadd.s32 7, %s435
          %s556 = scalar_lea.vmem [#allocation2], %s555
          // Predicated region
          $region109: #{tpu_custom_call.1} parent=79 // pred_check
            _
          $region110: #{tpu_custom_call.1} parent=79 // pred_check_branch
            %558 = sbr.rel target = $region112
          $region111: #{tpu_custom_call.1} parent=79 // pred_region
            %559 = sst [smem:[#allocation10]] [#allocation41]
            %560 = sst [smem:[#allocation11]] [#allocation40]
          $region112: #{tpu_custom_call.1} parent=79 // pred_fallthru
            _
          %562 = shalt.err (0)
          %s564 = sshll.u32 %s556, 4
          %s565 = int_to_ptr.vmem [resolvable:$true] %s564
          %567 = dma.hbm_to_vmem [thread:$0]  %s554, 16, %s565, %s437
        $region80: #{tpu_custom_call.1} parent=39 // pred_fallthru
          _
        %v568 = vld [vmem:[%s4] sm:$0x1]
        %v569 = vld [vmem:[%s4 + $0x1] sm:$0x1]
        %v570 = vsub.f32 %v569, %v568
        %v571 = vld [vmem:[%s269] sm:$0xff]
        %v572 = vlaneseq
        %v573 = vshrl.u32 %v572, 7
        %v574 = vsub.s32 0, %v573
        %v575 = vrot.slane %v568, %v574
        %v576 = vadd.f32 %v571, %v575
        %v577 = vld [vmem:[%s265] sm:$0xff]
        %579 = vset.pattern.permute.xlu0 0
        %580 = vperm.xlu0 %579, %v577
        %v581 = vpop.permute.xlu0 %580
        %v583 = vlaneseq
        %v584 = vshrl.u32 %v583, 7
        %v585 = vsub.s32 0, %v584
        %v586 = vrot.slane %v570, %v585
        %v587 = vmul.f32 %v581, %v586
        %v588 = vadd.f32 %v576, %v587
        %s589 = scalar_lea.sflag [#allocation3], %s281
        %s590 = smul.u32 1, 1
        %s591 = sshll.u32 %s590, 4
        %592 = dma.done %s589, %s591
        %s593 = sshll.u32 %s590, 4
        %594 = dma.done %s589, %s593
        %s595 = sshll.u32 %s590, 4
        %596 = dma.done %s589, %s595
        %s597 = sshll.u32 %s590, 4
        %598 = dma.done %s589, %s597
        %s599 = sshll.u32 %s590, 4
        %600 = dma.done %s589, %s599
        %s601 = sshll.u32 %s590, 4
        %602 = dma.done %s589, %s601
        %s603 = sshll.u32 %s590, 4
        %604 = dma.done %s589, %s603
        %s605 = sshll.u32 %s590, 4
        %606 = dma.done %s589, %s605
        %s607 = smul.u32 %s281, 8
        %s608 = scalar_lea.vmem [#allocation2], %s607
        %v609 = vld [vmem:[%s608] sm:$0xff]
        %v610 = vadd.f32 %v609, %v588
        %611 = vadd.xlane.f32.xlu0 %v610
        %v612 = vpop.xlane.xlu0 %611
        %v613 = vrcp.pop 128.0
        %v614 = vmul.f32 %v612, %v613
        %v615 = vsub.f32 %v610, %v614
        %v616 = vmul.f32 %v615, %v615
        %617 = vadd.xlane.f32.xlu0 %v616
        %v618 = vpop.xlane.xlu0 %617
        %v619 = vmul.f32 %v618, %v613
        %v620 = vld [vmem:[%s5] sm:$0x1]
        %v621 = vadd.f32 %v619, 1e-05
        %v622 = vrsqrt.pop %v621
        %v624 = vlaneseq
        %v625 = vshrl.u32 %v624, 7
        %v626 = vsub.s32 0, %v625
        %v627 = vrot.slane %v620, %v626
        %v629 = vmul.f32 %v627, %v622
        %v630 = vmul.f32 %v615, %v629
        %v631 = vld [vmem:[%s6] sm:$0x1]
        %v633 = vlaneseq
        %v634 = vshrl.u32 %v633, 7
        %v635 = vsub.s32 0, %v634
        %v636 = vrot.slane %v631, %v635
        %v638 = vadd.f32 %v630, %v636
        %639 = vst [vmem:[%s258] sm:$0xff] %v638
        %s640 = sand.u32 %s166, 1
        %s641 = scalar_lea.sflag [#allocation7], %s640
        %s642 = sand.u32 %s166, 1
        %s643 = smul.addr %s642, 8
        %s644 = scalar_lea.vmem [#allocation6], %s643
        // Predicated region
        $region113: #{tpu_custom_call.1} parent=39 // pred_check
          %p645 = pneg %p176
        $region114: #{tpu_custom_call.1} parent=39 // pred_check_branch
          %647 = sbr.rel (%p645) target = $region116
        $region115: #{tpu_custom_call.1} parent=39 // pred_region
          %s649 = ssub.s32 128, 128
          %650 = vsyncadd %s641, %s649
          %s651 = sadd.s32 %s32, %s31
          %s652 = smul.addr %s651, 128
          %s653 = scalar_lea.hbm %s7, %s652
          %s655 = sshll.u32 %s644, 4
          %s656 = int_to_ptr.vmem [resolvable:$true] %s655
          %658 = dma.vmem_to_hbm [thread:$0]  %s656, 128, %s653, %s641
        $region116: #{tpu_custom_call.1} parent=39 // pred_fallthru
          _
      $region40: #{tpu_custom_call.1} parent=5 // pred_fallthru
        _
      %p659 = scmp.le.s32.totalorder 2, %s22
      // Predicated region
      $region117: #{tpu_custom_call.1} parent=5 // pred_check
        %p660 = pneg %p659
      $region118: #{tpu_custom_call.1} parent=5 // pred_check_branch
        %662 = sbr.rel (%p660) target = $region120
      $region119: #{tpu_custom_call.1} parent=5 // pred_region
        %s663 = ssub.s32 %s22, 2
        // Predicated region
        $region121: #{tpu_custom_call.1} parent=119 // pred_check
          %p664 = pneg %p182
        $region122: #{tpu_custom_call.1} parent=119 // pred_check_branch
          %666 = sbr.rel (%p664) target = $region124
        $region123: #{tpu_custom_call.1} parent=119 // pred_region
          %s667 = sand.u32 %s167, 1
          %s668 = scalar_lea.sflag [#allocation7], %s667
          %s669 = sand.u32 %s167, 1
          %s670 = smul.addr %s669, 8
          %s671 = scalar_lea.vmem [#allocation6], %s670
          %672 = dma.done %s668, 128
        $region124: #{tpu_custom_call.1} parent=119 // pred_fallthru
          _
      $region120: #{tpu_custom_call.1} parent=5 // pred_fallthru
        _
    $region6: #{tpu_custom_call.1} parent=1 // loop_footer
      %s26 = sadd.s32 1, %s22
    $region7: #{tpu_custom_call.1} parent=1 // loop_footer_branch
      %21 = sbr.rel target = $region3
    $region8: #{tpu_custom_call.1} parent=1 // loop_exit
      _
    %673 = vsyncpa [#allocation7], 1
    %s674 = scalar_lea.sflag [#allocation7], 1
    %675 = vsyncpa %s674, 1
  %676 = vsyncmov [#allocation3]
  %s677 = vpop.sfrf %676
  %p678 = scmp.eq.s32.totalorder %s677, 0
  %p679 = pneg %p678
  %681 = shalt.err (%p679)
  %s682 = scalar_lea.sflag [#allocation3], 1
  %683 = vsyncmov %s682
  %s684 = vpop.sfrf %683
  %p685 = scmp.eq.s32.totalorder %s684, 0
  %p686 = pneg %p685
  %688 = shalt.err (%p686)

</llo_original>
